<compile_context>
chip_gen: v7x
topology: tpu7x:2x2x1
jax: 0.10.0
libtpu: 0.0.40
codegen_flags: <defaults>
</compile_context>

<pallas_src>
import functools

import jax
import jax.numpy as jnp
from jax.experimental import pallas as pl
from jax.experimental.pallas import tpu as pltpu


def _residual_block_kernel(x_ref, w1_ref, b1_ref, w2_ref, b2_ref, out_ref, *, H, W):
    """One batch element per grid step, channel-major layout.

    x_ref  : (1, C, HW + 4*(W+1))  flattened (h*W + w) image on lanes with a
             zero halo of 2*(W+1) lanes on each side; real pixels at lanes
             [2*(W+1), 2*(W+1) + HW).
    w1_ref : (9, C, C)   conv1 weights, one (Cout, Cin) matrix per 3x3 tap
                         (tap j = (dh+1)*3 + (dw+1)).
    b1_ref : (C, 1)
    w2_ref : (9, C, C)   conv2 weights, same layout.
    b2_ref : (C, 1)
    out_ref: (1, C, HW)  lane-dense channel-major output block.
    """
    HW = H * W
    halo = W + 1              # max |lane offset| of a 3x3 tap in flattened h*W+w
    L1 = HW + 2 * halo        # extended lane range conv1 is evaluated over
    Cout = w1_ref.shape[1]

    x = x_ref[0]                                            # (C, HW + 4*halo)

    # Column index of each lane (W is a power of two here -> cheap and-mask).
    lane1 = jax.lax.broadcasted_iota(jnp.int32, (1, L1), 1)
    col1 = (lane1 + (W - 1)) % W          # column of flat index (lane - halo)
    in_img = (lane1 >= halo) & (lane1 < halo + HW)
    col2 = jax.lax.broadcasted_iota(jnp.int32, (1, HW), 1) % W

    def conv3x3(src, w_ref, n_lanes, col):
        # src has a zero (or zeroed) halo of >= halo lanes around the range we
        # evaluate, so dh = +-1 out-of-image reads contribute zero for free;
        # only the dw = +-1 column wrap-around needs one select per dw group.
        acc = jnp.zeros((Cout, n_lanes), jnp.float32)
        for dw in (-1, 0, 1):
            g = jnp.zeros((Cout, n_lanes), jnp.float32)
            for dh in (-1, 0, 1):
                j = (dh + 1) * 3 + (dw + 1)
                s = halo + dh * W + dw                       # static, in [0, 2*halo]
                g = g + jnp.dot(w_ref[j], src[:, s:s + n_lanes],
                                preferred_element_type=jnp.float32)
            if dw == -1:
                g = jnp.where(col >= 1, g, 0.0)
            elif dw == 1:
                g = jnp.where(col <= W - 2, g, 0.0)
            acc = acc + g
        return acc

    # ---- conv1 over the extended lane range [-halo, HW+halo) so that conv2's
    #      shifted reads below are static in-bounds slices.  Halo lanes of mid
    #      are explicitly zeroed by folding the in-image test into the ReLU. ----
    acc1 = conv3x3(x, w1_ref, L1, col1)                      # (C, L1)
    mid = jnp.where(in_img, jnp.maximum(acc1 + b1_ref[...], 0.0), 0.0)

    # ---- conv2 + bias + residual (plain elementwise add, exact) ----
    acc2 = conv3x3(mid, w2_ref, HW, col2)                    # (C, HW)
    acc2 = acc2 + b2_ref[...] + x[:, 2 * halo:2 * halo + HW]

    out_ref[...] = acc2.reshape(out_ref.shape).astype(out_ref.dtype)


def residual_block(x_nchw, w1, b1, w2, b2):
    """x_nchw: (N, C, H, W) float32; weights in PyTorch layout (Cout, Cin, 3, 3)."""
    N, C, H, W = x_nchw.shape
    Cout = w1.shape[0]
    assert Cout == C, "residual add requires out_channels == in_channels"

    HW = H * W
    halo = W + 1
    L0 = HW + 4 * halo                     # per-image lanes fed to the kernel

    # NCHW -> (N, C, H*W) is a pure reshape (no relayout); the only data-movement
    # pass in the wrapper is the flat 1-D halo pad along lanes.
    x_flat = x_nchw.reshape(N, C, HW)
    x_ext = jnp.pad(x_flat, ((0, 0), (0, 0), (2 * halo, 2 * halo)))

    # (Cout, Cin, 3, 3) -> per-tap (9, Cout, Cin); tap order matches the kernel's
    # j = (dh+1)*3 + (dw+1) indexing.
    w1_taps = jnp.transpose(w1, (2, 3, 0, 1)).reshape(9, Cout, C).astype(jnp.float32)
    w2_taps = jnp.transpose(w2, (2, 3, 0, 1)).reshape(9, Cout, C).astype(jnp.float32)
    b1_2d = b1.reshape(Cout, 1).astype(jnp.float32)
    b2_2d = b2.reshape(Cout, 1).astype(jnp.float32)

    kernel = functools.partial(_residual_block_kernel, H=H, W=W)

    out = pl.pallas_call(
        kernel,
        out_shape=jax.ShapeDtypeStruct((N, Cout, HW), x_nchw.dtype),
        grid_spec=pltpu.PrefetchScalarGridSpec(
            num_scalar_prefetch=0,
            grid=(N,),                                       # one image per step
            in_specs=[
                pl.BlockSpec((1, C, L0), lambda n: (n, 0, 0)),
                pl.BlockSpec((9, Cout, C), lambda n: (0, 0, 0)),
                pl.BlockSpec((Cout, 1), lambda n: (0, 0)),
                pl.BlockSpec((9, Cout, C), lambda n: (0, 0, 0)),
                pl.BlockSpec((Cout, 1), lambda n: (0, 0)),
            ],
            out_specs=pl.BlockSpec((1, Cout, HW), lambda n: (n, 0, 0)),
        ),
        compiler_params=pltpu.CompilerParams(
            dimension_semantics=("parallel",)),              # v7x: 2 TCs split batch
    )(x_ext, w1_taps, b1_2d, w2_taps, b2_2d)

    return out.reshape(N, Cout, H, W)                        # channel-major == NCHW


def residual_block_ref(x, w1, b1, w2, b2):
    """Pure-JAX reference (matches PyTorch semantics) for verification."""
    dn = jax.lax.conv_dimension_numbers(x.shape, w1.shape, ("NCHW", "OIHW", "NCHW"))
    out = jax.lax.conv_general_dilated(x, w1, (1, 1), "SAME", dimension_numbers=dn)
    out = out + b1.reshape(1, -1, 1, 1)
    out = jnp.maximum(out, 0.0)
    out = jax.lax.conv_general_dilated(out, w2, (1, 1), "SAME", dimension_numbers=dn)
    out = out + b2.reshape(1, -1, 1, 1)
    return out + x


if __name__ == "__main__":
    # Small shapes consistent with the module: N=2, C=4 (in == out), 16x16 spatial.
    N, C, H, W = 2, 4, 16, 16

    key = jax.random.PRNGKey(0)
    kx, kw1, kb1, kw2, kb2 = jax.random.split(key, 5)

    x = jax.random.normal(kx, (N, C, H, W), dtype=jnp.float32)
    # Deterministic synthetic parameters (PyTorch Conv2d shapes: (Cout, Cin, 3, 3)).
    w1 = 0.1 * jax.random.normal(kw1, (C, C, 3, 3), dtype=jnp.float32)
    b1 = 0.1 * jax.random.normal(kb1, (C,), dtype=jnp.float32)
    w2 = 0.1 * jax.random.normal(kw2, (C, C, 3, 3), dtype=jnp.float32)
    b2 = 0.1 * jax.random.normal(kb2, (C,), dtype=jnp.float32)

    out = residual_block(x, w1, b1, w2, b2)
    out = jax.block_until_ready(out)

    ref = jax.block_until_ready(residual_block_ref(x, w1, b1, w2, b2))

    assert out.shape == (N, C, H, W)
    assert bool(jnp.all(jnp.isfinite(out)))
    assert bool(jnp.allclose(out, ref, atol=1e-5, rtol=1e-5)), (
        f"max abs diff {float(jnp.max(jnp.abs(out - ref)))}")

    print("KERNEL_OK")
</pallas_src>

<mosaic_0001>
module attributes {stable_mosaic.version = 11 : i64} {
  func.func @_residual_block_kernel(%arg0: i32, %arg1: memref<1x4x324xf32, #tpu.memory_space<vmem>>, %arg2: memref<9x4x4xf32, #tpu.memory_space<vmem>>, %arg3: memref<4x1xf32, #tpu.memory_space<vmem>>, %arg4: memref<9x4x4xf32, #tpu.memory_space<vmem>>, %arg5: memref<4x1xf32, #tpu.memory_space<vmem>>, %arg6: memref<1x4x256xf32, #tpu.memory_space<vmem>>) attributes {dimension_semantics = [#tpu.dimension_semantics<parallel>], iteration_bounds = array<i64: 2>, scalar_prefetch = 0 : i64, scratch_operands = 0 : i64, tpu.core_type = #tpu.core_type<tc>, window_params = [{transform_indices = @transform_0, window_bounds = array<i64: 1, 4, 324>}, {pipeline_mode = #tpu.pipeline_mode<synchronous>, transform_indices = @transform_1, window_bounds = array<i64: 9, 4, 4>}, {pipeline_mode = #tpu.pipeline_mode<synchronous>, transform_indices = @transform_2, window_bounds = array<i64: 4, 1>}, {pipeline_mode = #tpu.pipeline_mode<synchronous>, transform_indices = @transform_3, window_bounds = array<i64: 9, 4, 4>}, {pipeline_mode = #tpu.pipeline_mode<synchronous>, transform_indices = @transform_4, window_bounds = array<i64: 4, 1>}, {transform_indices = @transform_5, window_bounds = array<i64: 1, 4, 256>}]} {
    %c0 = arith.constant 0 : index
    %c0_0 = arith.constant 0 : index
    %c0_1 = arith.constant 0 : index
    %0 = vector.load %arg1[%c0, %c0_0, %c0_1] : memref<1x4x324xf32, #tpu.memory_space<vmem>>, vector<1x4x324xf32>
    %1 = vector.shape_cast %0 : vector<1x4x324xf32> to vector<4x324xf32>
    %2 = tpu.iota {dimensions = array<i32: 1>} : vector<1x290xi32>
    %c15_i32 = arith.constant 15 : i32
    %3 = vector.broadcast %c15_i32 : i32 to vector<1x290xi32>
    %4 = arith.addi %2, %3 : vector<1x290xi32>
    %c16_i32 = arith.constant 16 : i32
    %c0_i32 = arith.constant 0 : i32
    %5 = arith.cmpi eq, %c16_i32, %c0_i32 : i32
    %c1_i32 = arith.constant 1 : i32
    %6 = arith.select %5, %c1_i32, %c16_i32 : i32
    %7 = vector.broadcast %6 : i32 to vector<1x290xi32>
    %8 = arith.remsi %4, %7 : vector<1x290xi32>
    %c0_i32_2 = arith.constant 0 : i32
    %9 = vector.broadcast %c0_i32_2 : i32 to vector<1x290xi32>
    %10 = arith.cmpi ne, %8, %9 : vector<1x290xi32>
    %c0_i32_3 = arith.constant 0 : i32
    %11 = vector.broadcast %c0_i32_3 : i32 to vector<1x290xi32>
    %12 = arith.cmpi slt, %8, %11 : vector<1x290xi32>
    %c0_i32_4 = arith.constant 0 : i32
    %13 = arith.cmpi slt, %6, %c0_i32_4 : i32
    %14 = vector.broadcast %13 : i1 to vector<1x290xi1>
    %15 = vector.broadcast %14 : vector<1x290xi1> to vector<1x290xi1>
    %16 = arith.xori %12, %15 : vector<1x290xi1>
    %17 = arith.andi %16, %10 : vector<1x290xi1>
    %18 = vector.broadcast %6 : i32 to vector<1x290xi32>
    %19 = arith.addi %8, %18 : vector<1x290xi32>
    %20 = arith.select %17, %19, %8 : vector<1x290xi1>, vector<1x290xi32>
    %c17_i32 = arith.constant 17 : i32
    %21 = vector.broadcast %c17_i32 : i32 to vector<1x290xi32>
    %22 = arith.cmpi sge, %2, %21 : vector<1x290xi32>
    %c273_i32 = arith.constant 273 : i32
    %23 = vector.broadcast %c273_i32 : i32 to vector<1x290xi32>
    %24 = arith.cmpi slt, %2, %23 : vector<1x290xi32>
    %25 = arith.andi %22, %24 : vector<1x290xi1>
    %26 = tpu.iota {dimensions = array<i32: 1>} : vector<1x256xi32>
    %c16_i32_5 = arith.constant 16 : i32
    %c0_i32_6 = arith.constant 0 : i32
    %27 = arith.cmpi eq, %c16_i32_5, %c0_i32_6 : i32
    %c1_i32_7 = arith.constant 1 : i32
    %28 = arith.select %27, %c1_i32_7, %c16_i32_5 : i32
    %29 = vector.broadcast %28 : i32 to vector<1x256xi32>
    %30 = arith.remsi %26, %29 : vector<1x256xi32>
    %c0_i32_8 = arith.constant 0 : i32
    %31 = vector.broadcast %c0_i32_8 : i32 to vector<1x256xi32>
    %32 = arith.cmpi ne, %30, %31 : vector<1x256xi32>
    %c0_i32_9 = arith.constant 0 : i32
    %33 = vector.broadcast %c0_i32_9 : i32 to vector<1x256xi32>
    %34 = arith.cmpi slt, %30, %33 : vector<1x256xi32>
    %c0_i32_10 = arith.constant 0 : i32
    %35 = arith.cmpi slt, %28, %c0_i32_10 : i32
    %36 = vector.broadcast %35 : i1 to vector<1x256xi1>
    %37 = vector.broadcast %36 : vector<1x256xi1> to vector<1x256xi1>
    %38 = arith.xori %34, %37 : vector<1x256xi1>
    %39 = arith.andi %38, %32 : vector<1x256xi1>
    %40 = vector.broadcast %28 : i32 to vector<1x256xi32>
    %41 = arith.addi %30, %40 : vector<1x256xi32>
    %42 = arith.select %39, %41, %30 : vector<1x256xi1>, vector<1x256xi32>
    %cst = arith.constant 0.000000e+00 : f32
    %43 = vector.broadcast %cst : f32 to vector<4x290xf32>
    %cst_11 = arith.constant 0.000000e+00 : f32
    %44 = vector.broadcast %cst_11 : f32 to vector<4x290xf32>
    %c0_12 = arith.constant 0 : index
    %c0_13 = arith.constant 0 : index
    %c0_14 = arith.constant 0 : index
    %45 = vector.load %arg2[%c0_12, %c0_13, %c0_14] : memref<9x4x4xf32, #tpu.memory_space<vmem>>, vector<1x4x4xf32>
    %46 = vector.shape_cast %45 : vector<1x4x4xf32> to vector<4x4xf32>
    %47 = vector.extract_strided_slice %1 {offsets = [0, 0], sizes = [4, 290], strides = [1, 1]} : vector<4x324xf32> to vector<4x290xf32>
    %cst_15 = arith.constant dense<0.000000e+00> : vector<4x290xf32>
    %48 = tpu.matmul %46, %47, %cst_15 {dimension_numbers = #tpu.dot_dimension_numbers<[1], [0], [0], [1], [0, 0, 1, 1], [], []>} : vector<4x4xf32>, vector<4x290xf32>, vector<4x290xf32> -> vector<4x290xf32>
    %49 = arith.addf %44, %48 : vector<4x290xf32>
    %c3 = arith.constant 3 : index
    %c0_16 = arith.constant 0 : index
    %c0_17 = arith.constant 0 : index
    %50 = vector.load %arg2[%c3, %c0_16, %c0_17] : memref<9x4x4xf32, #tpu.memory_space<vmem>>, vector<1x4x4xf32>
    %51 = vector.shape_cast %50 : vector<1x4x4xf32> to vector<4x4xf32>
    %52 = vector.extract_strided_slice %1 {offsets = [0, 16], sizes = [4, 290], strides = [1, 1]} : vector<4x324xf32> to vector<4x290xf32>
    %cst_18 = arith.constant dense<0.000000e+00> : vector<4x290xf32>
    %53 = tpu.matmul %51, %52, %cst_18 {dimension_numbers = #tpu.dot_dimension_numbers<[1], [0], [0], [1], [0, 0, 1, 1], [], []>} : vector<4x4xf32>, vector<4x290xf32>, vector<4x290xf32> -> vector<4x290xf32>
    %54 = arith.addf %49, %53 : vector<4x290xf32>
    %c6 = arith.constant 6 : index
    %c0_19 = arith.constant 0 : index
    %c0_20 = arith.constant 0 : index
    %55 = vector.load %arg2[%c6, %c0_19, %c0_20] : memref<9x4x4xf32, #tpu.memory_space<vmem>>, vector<1x4x4xf32>
    %56 = vector.shape_cast %55 : vector<1x4x4xf32> to vector<4x4xf32>
    %57 = vector.extract_strided_slice %1 {offsets = [0, 32], sizes = [4, 290], strides = [1, 1]} : vector<4x324xf32> to vector<4x290xf32>
    %cst_21 = arith.constant dense<0.000000e+00> : vector<4x290xf32>
    %58 = tpu.matmul %56, %57, %cst_21 {dimension_numbers = #tpu.dot_dimension_numbers<[1], [0], [0], [1], [0, 0, 1, 1], [], []>} : vector<4x4xf32>, vector<4x290xf32>, vector<4x290xf32> -> vector<4x290xf32>
    %59 = arith.addf %54, %58 : vector<4x290xf32>
    %c1_i32_22 = arith.constant 1 : i32
    %60 = vector.broadcast %c1_i32_22 : i32 to vector<1x290xi32>
    %61 = arith.cmpi sge, %20, %60 : vector<1x290xi32>
    %cst_23 = arith.constant 0.000000e+00 : f32
    %62 = vector.shape_cast %61 : vector<1x290xi1> to vector<1x290xi1>
    %63 = vector.broadcast %62 : vector<1x290xi1> to vector<4x290xi1>
    %64 = vector.broadcast %cst_23 : f32 to vector<4x290xf32>
    %65 = arith.select %63, %59, %64 : vector<4x290xi1>, vector<4x290xf32>
    %66 = arith.addf %43, %65 : vector<4x290xf32>
    %cst_24 = arith.constant 0.000000e+00 : f32
    %67 = vector.broadcast %cst_24 : f32 to vector<4x290xf32>
    %c1 = arith.constant 1 : index
    %c0_25 = arith.constant 0 : index
    %c0_26 = arith.constant 0 : index
    %68 = vector.load %arg2[%c1, %c0_25, %c0_26] : memref<9x4x4xf32, #tpu.memory_space<vmem>>, vector<1x4x4xf32>
    %69 = vector.shape_cast %68 : vector<1x4x4xf32> to vector<4x4xf32>
    %70 = vector.extract_strided_slice %1 {offsets = [0, 1], sizes = [4, 290], strides = [1, 1]} : vector<4x324xf32> to vector<4x290xf32>
    %cst_27 = arith.constant dense<0.000000e+00> : vector<4x290xf32>
    %71 = tpu.matmul %69, %70, %cst_27 {dimension_numbers = #tpu.dot_dimension_numbers<[1], [0], [0], [1], [0, 0, 1, 1], [], []>} : vector<4x4xf32>, vector<4x290xf32>, vector<4x290xf32> -> vector<4x290xf32>
    %72 = arith.addf %67, %71 : vector<4x290xf32>
    %c4 = arith.constant 4 : index
    %c0_28 = arith.constant 0 : index
    %c0_29 = arith.constant 0 : index
    %73 = vector.load %arg2[%c4, %c0_28, %c0_29] : memref<9x4x4xf32, #tpu.memory_space<vmem>>, vector<1x4x4xf32>
    %74 = vector.shape_cast %73 : vector<1x4x4xf32> to vector<4x4xf32>
    %75 = vector.extract_strided_slice %1 {offsets = [0, 17], sizes = [4, 290], strides = [1, 1]} : vector<4x324xf32> to vector<4x290xf32>
    %cst_30 = arith.constant dense<0.000000e+00> : vector<4x290xf32>
    %76 = tpu.matmul %74, %75, %cst_30 {dimension_numbers = #tpu.dot_dimension_numbers<[1], [0], [0], [1], [0, 0, 1, 1], [], []>} : vector<4x4xf32>, vector<4x290xf32>, vector<4x290xf32> -> vector<4x290xf32>
    %77 = arith.addf %72, %76 : vector<4x290xf32>
    %c7 = arith.constant 7 : index
    %c0_31 = arith.constant 0 : index
    %c0_32 = arith.constant 0 : index
    %78 = vector.load %arg2[%c7, %c0_31, %c0_32] : memref<9x4x4xf32, #tpu.memory_space<vmem>>, vector<1x4x4xf32>
    %79 = vector.shape_cast %78 : vector<1x4x4xf32> to vector<4x4xf32>
    %80 = vector.extract_strided_slice %1 {offsets = [0, 33], sizes = [4, 290], strides = [1, 1]} : vector<4x324xf32> to vector<4x290xf32>
    %cst_33 = arith.constant dense<0.000000e+00> : vector<4x290xf32>
    %81 = tpu.matmul %79, %80, %cst_33 {dimension_numbers = #tpu.dot_dimension_numbers<[1], [0], [0], [1], [0, 0, 1, 1], [], []>} : vector<4x4xf32>, vector<4x290xf32>, vector<4x290xf32> -> vector<4x290xf32>
    %82 = arith.addf %77, %81 : vector<4x290xf32>
    %83 = arith.addf %66, %82 : vector<4x290xf32>
    %cst_34 = arith.constant 0.000000e+00 : f32
    %84 = vector.broadcast %cst_34 : f32 to vector<4x290xf32>
    %c2 = arith.constant 2 : index
    %c0_35 = arith.constant 0 : index
    %c0_36 = arith.constant 0 : index
    %85 = vector.load %arg2[%c2, %c0_35, %c0_36] : memref<9x4x4xf32, #tpu.memory_space<vmem>>, vector<1x4x4xf32>
    %86 = vector.shape_cast %85 : vector<1x4x4xf32> to vector<4x4xf32>
    %87 = vector.extract_strided_slice %1 {offsets = [0, 2], sizes = [4, 290], strides = [1, 1]} : vector<4x324xf32> to vector<4x290xf32>
    %cst_37 = arith.constant dense<0.000000e+00> : vector<4x290xf32>
    %88 = tpu.matmul %86, %87, %cst_37 {dimension_numbers = #tpu.dot_dimension_numbers<[1], [0], [0], [1], [0, 0, 1, 1], [], []>} : vector<4x4xf32>, vector<4x290xf32>, vector<4x290xf32> -> vector<4x290xf32>
    %89 = arith.addf %84, %88 : vector<4x290xf32>
    %c5 = arith.constant 5 : index
    %c0_38 = arith.constant 0 : index
    %c0_39 = arith.constant 0 : index
    %90 = vector.load %arg2[%c5, %c0_38, %c0_39] : memref<9x4x4xf32, #tpu.memory_space<vmem>>, vector<1x4x4xf32>
    %91 = vector.shape_cast %90 : vector<1x4x4xf32> to vector<4x4xf32>
    %92 = vector.extract_strided_slice %1 {offsets = [0, 18], sizes = [4, 290], strides = [1, 1]} : vector<4x324xf32> to vector<4x290xf32>
    %cst_40 = arith.constant dense<0.000000e+00> : vector<4x290xf32>
    %93 = tpu.matmul %91, %92, %cst_40 {dimension_numbers = #tpu.dot_dimension_numbers<[1], [0], [0], [1], [0, 0, 1, 1], [], []>} : vector<4x4xf32>, vector<4x290xf32>, vector<4x290xf32> -> vector<4x290xf32>
    %94 = arith.addf %89, %93 : vector<4x290xf32>
    %c8 = arith.constant 8 : index
    %c0_41 = arith.constant 0 : index
    %c0_42 = arith.constant 0 : index
    %95 = vector.load %arg2[%c8, %c0_41, %c0_42] : memref<9x4x4xf32, #tpu.memory_space<vmem>>, vector<1x4x4xf32>
    %96 = vector.shape_cast %95 : vector<1x4x4xf32> to vector<4x4xf32>
    %97 = vector.extract_strided_slice %1 {offsets = [0, 34], sizes = [4, 290], strides = [1, 1]} : vector<4x324xf32> to vector<4x290xf32>
    %cst_43 = arith.constant dense<0.000000e+00> : vector<4x290xf32>
    %98 = tpu.matmul %96, %97, %cst_43 {dimension_numbers = #tpu.dot_dimension_numbers<[1], [0], [0], [1], [0, 0, 1, 1], [], []>} : vector<4x4xf32>, vector<4x290xf32>, vector<4x290xf32> -> vector<4x290xf32>
    %99 = arith.addf %94, %98 : vector<4x290xf32>
    %c14_i32 = arith.constant 14 : i32
    %100 = vector.broadcast %c14_i32 : i32 to vector<1x290xi32>
    %101 = arith.cmpi sle, %20, %100 : vector<1x290xi32>
    %cst_44 = arith.constant 0.000000e+00 : f32
    %102 = vector.shape_cast %101 : vector<1x290xi1> to vector<1x290xi1>
    %103 = vector.broadcast %102 : vector<1x290xi1> to vector<4x290xi1>
    %104 = vector.broadcast %cst_44 : f32 to vector<4x290xf32>
    %105 = arith.select %103, %99, %104 : vector<4x290xi1>, vector<4x290xf32>
    %106 = arith.addf %83, %105 : vector<4x290xf32>
    %c0_45 = arith.constant 0 : index
    %c0_46 = arith.constant 0 : index
    %107 = vector.load %arg3[%c0_45, %c0_46] : memref<4x1xf32, #tpu.memory_space<vmem>>, vector<4x1xf32>
    %108 = vector.broadcast %107 : vector<4x1xf32> to vector<4x290xf32>
    %109 = arith.addf %106, %108 : vector<4x290xf32>
    %cst_47 = arith.constant 0.000000e+00 : f32
    %110 = vector.broadcast %cst_47 : f32 to vector<4x290xf32>
    %111 = arith.maximumf %109, %110 : vector<4x290xf32>
    %cst_48 = arith.constant 0.000000e+00 : f32
    %112 = vector.shape_cast %25 : vector<1x290xi1> to vector<1x290xi1>
    %113 = vector.broadcast %112 : vector<1x290xi1> to vector<4x290xi1>
    %114 = vector.broadcast %cst_48 : f32 to vector<4x290xf32>
    %115 = arith.select %113, %111, %114 : vector<4x290xi1>, vector<4x290xf32>
    %cst_49 = arith.constant 0.000000e+00 : f32
    %116 = vector.broadcast %cst_49 : f32 to vector<4x256xf32>
    %cst_50 = arith.constant 0.000000e+00 : f32
    %117 = vector.broadcast %cst_50 : f32 to vector<4x256xf32>
    %c0_51 = arith.constant 0 : index
    %c0_52 = arith.constant 0 : index
    %c0_53 = arith.constant 0 : index
    %118 = vector.load %arg4[%c0_51, %c0_52, %c0_53] : memref<9x4x4xf32, #tpu.memory_space<vmem>>, vector<1x4x4xf32>
    %119 = vector.shape_cast %118 : vector<1x4x4xf32> to vector<4x4xf32>
    %120 = vector.extract_strided_slice %115 {offsets = [0, 0], sizes = [4, 256], strides = [1, 1]} : vector<4x290xf32> to vector<4x256xf32>
    %cst_54 = arith.constant dense<0.000000e+00> : vector<4x256xf32>
    %121 = tpu.matmul %119, %120, %cst_54 {dimension_numbers = #tpu.dot_dimension_numbers<[1], [0], [0], [1], [0, 0, 1, 1], [], []>} : vector<4x4xf32>, vector<4x256xf32>, vector<4x256xf32> -> vector<4x256xf32>
    %122 = arith.addf %117, %121 : vector<4x256xf32>
    %c3_55 = arith.constant 3 : index
    %c0_56 = arith.constant 0 : index
    %c0_57 = arith.constant 0 : index
    %123 = vector.load %arg4[%c3_55, %c0_56, %c0_57] : memref<9x4x4xf32, #tpu.memory_space<vmem>>, vector<1x4x4xf32>
    %124 = vector.shape_cast %123 : vector<1x4x4xf32> to vector<4x4xf32>
    %125 = vector.extract_strided_slice %115 {offsets = [0, 16], sizes = [4, 256], strides = [1, 1]} : vector<4x290xf32> to vector<4x256xf32>
    %cst_58 = arith.constant dense<0.000000e+00> : vector<4x256xf32>
    %126 = tpu.matmul %124, %125, %cst_58 {dimension_numbers = #tpu.dot_dimension_numbers<[1], [0], [0], [1], [0, 0, 1, 1], [], []>} : vector<4x4xf32>, vector<4x256xf32>, vector<4x256xf32> -> vector<4x256xf32>
    %127 = arith.addf %122, %126 : vector<4x256xf32>
    %c6_59 = arith.constant 6 : index
    %c0_60 = arith.constant 0 : index
    %c0_61 = arith.constant 0 : index
    %128 = vector.load %arg4[%c6_59, %c0_60, %c0_61] : memref<9x4x4xf32, #tpu.memory_space<vmem>>, vector<1x4x4xf32>
    %129 = vector.shape_cast %128 : vector<1x4x4xf32> to vector<4x4xf32>
    %130 = vector.extract_strided_slice %115 {offsets = [0, 32], sizes = [4, 256], strides = [1, 1]} : vector<4x290xf32> to vector<4x256xf32>
    %cst_62 = arith.constant dense<0.000000e+00> : vector<4x256xf32>
    %131 = tpu.matmul %129, %130, %cst_62 {dimension_numbers = #tpu.dot_dimension_numbers<[1], [0], [0], [1], [0, 0, 1, 1], [], []>} : vector<4x4xf32>, vector<4x256xf32>, vector<4x256xf32> -> vector<4x256xf32>
    %132 = arith.addf %127, %131 : vector<4x256xf32>
    %c1_i32_63 = arith.constant 1 : i32
    %133 = vector.broadcast %c1_i32_63 : i32 to vector<1x256xi32>
    %134 = arith.cmpi sge, %42, %133 : vector<1x256xi32>
    %cst_64 = arith.constant 0.000000e+00 : f32
    %135 = vector.shape_cast %134 : vector<1x256xi1> to vector<1x256xi1>
    %136 = vector.broadcast %135 : vector<1x256xi1> to vector<4x256xi1>
    %137 = vector.broadcast %cst_64 : f32 to vector<4x256xf32>
    %138 = arith.select %136, %132, %137 : vector<4x256xi1>, vector<4x256xf32>
    %139 = arith.addf %116, %138 : vector<4x256xf32>
    %cst_65 = arith.constant 0.000000e+00 : f32
    %140 = vector.broadcast %cst_65 : f32 to vector<4x256xf32>
    %c1_66 = arith.constant 1 : index
    %c0_67 = arith.constant 0 : index
    %c0_68 = arith.constant 0 : index
    %141 = vector.load %arg4[%c1_66, %c0_67, %c0_68] : memref<9x4x4xf32, #tpu.memory_space<vmem>>, vector<1x4x4xf32>
    %142 = vector.shape_cast %141 : vector<1x4x4xf32> to vector<4x4xf32>
    %143 = vector.extract_strided_slice %115 {offsets = [0, 1], sizes = [4, 256], strides = [1, 1]} : vector<4x290xf32> to vector<4x256xf32>
    %cst_69 = arith.constant dense<0.000000e+00> : vector<4x256xf32>
    %144 = tpu.matmul %142, %143, %cst_69 {dimension_numbers = #tpu.dot_dimension_numbers<[1], [0], [0], [1], [0, 0, 1, 1], [], []>} : vector<4x4xf32>, vector<4x256xf32>, vector<4x256xf32> -> vector<4x256xf32>
    %145 = arith.addf %140, %144 : vector<4x256xf32>
    %c4_70 = arith.constant 4 : index
    %c0_71 = arith.constant 0 : index
    %c0_72 = arith.constant 0 : index
    %146 = vector.load %arg4[%c4_70, %c0_71, %c0_72] : memref<9x4x4xf32, #tpu.memory_space<vmem>>, vector<1x4x4xf32>
    %147 = vector.shape_cast %146 : vector<1x4x4xf32> to vector<4x4xf32>
    %148 = vector.extract_strided_slice %115 {offsets = [0, 17], sizes = [4, 256], strides = [1, 1]} : vector<4x290xf32> to vector<4x256xf32>
    %cst_73 = arith.constant dense<0.000000e+00> : vector<4x256xf32>
    %149 = tpu.matmul %147, %148, %cst_73 {dimension_numbers = #tpu.dot_dimension_numbers<[1], [0], [0], [1], [0, 0, 1, 1], [], []>} : vector<4x4xf32>, vector<4x256xf32>, vector<4x256xf32> -> vector<4x256xf32>
    %150 = arith.addf %145, %149 : vector<4x256xf32>
    %c7_74 = arith.constant 7 : index
    %c0_75 = arith.constant 0 : index
    %c0_76 = arith.constant 0 : index
    %151 = vector.load %arg4[%c7_74, %c0_75, %c0_76] : memref<9x4x4xf32, #tpu.memory_space<vmem>>, vector<1x4x4xf32>
    %152 = vector.shape_cast %151 : vector<1x4x4xf32> to vector<4x4xf32>
    %153 = vector.extract_strided_slice %115 {offsets = [0, 33], sizes = [4, 256], strides = [1, 1]} : vector<4x290xf32> to vector<4x256xf32>
    %cst_77 = arith.constant dense<0.000000e+00> : vector<4x256xf32>
    %154 = tpu.matmul %152, %153, %cst_77 {dimension_numbers = #tpu.dot_dimension_numbers<[1], [0], [0], [1], [0, 0, 1, 1], [], []>} : vector<4x4xf32>, vector<4x256xf32>, vector<4x256xf32> -> vector<4x256xf32>
    %155 = arith.addf %150, %154 : vector<4x256xf32>
    %156 = arith.addf %139, %155 : vector<4x256xf32>
    %cst_78 = arith.constant 0.000000e+00 : f32
    %157 = vector.broadcast %cst_78 : f32 to vector<4x256xf32>
    %c2_79 = arith.constant 2 : index
    %c0_80 = arith.constant 0 : index
    %c0_81 = arith.constant 0 : index
    %158 = vector.load %arg4[%c2_79, %c0_80, %c0_81] : memref<9x4x4xf32, #tpu.memory_space<vmem>>, vector<1x4x4xf32>
    %159 = vector.shape_cast %158 : vector<1x4x4xf32> to vector<4x4xf32>
    %160 = vector.extract_strided_slice %115 {offsets = [0, 2], sizes = [4, 256], strides = [1, 1]} : vector<4x290xf32> to vector<4x256xf32>
    %cst_82 = arith.constant dense<0.000000e+00> : vector<4x256xf32>
    %161 = tpu.matmul %159, %160, %cst_82 {dimension_numbers = #tpu.dot_dimension_numbers<[1], [0], [0], [1], [0, 0, 1, 1], [], []>} : vector<4x4xf32>, vector<4x256xf32>, vector<4x256xf32> -> vector<4x256xf32>
    %162 = arith.addf %157, %161 : vector<4x256xf32>
    %c5_83 = arith.constant 5 : index
    %c0_84 = arith.constant 0 : index
    %c0_85 = arith.constant 0 : index
    %163 = vector.load %arg4[%c5_83, %c0_84, %c0_85] : memref<9x4x4xf32, #tpu.memory_space<vmem>>, vector<1x4x4xf32>
    %164 = vector.shape_cast %163 : vector<1x4x4xf32> to vector<4x4xf32>
    %165 = vector.extract_strided_slice %115 {offsets = [0, 18], sizes = [4, 256], strides = [1, 1]} : vector<4x290xf32> to vector<4x256xf32>
    %cst_86 = arith.constant dense<0.000000e+00> : vector<4x256xf32>
    %166 = tpu.matmul %164, %165, %cst_86 {dimension_numbers = #tpu.dot_dimension_numbers<[1], [0], [0], [1], [0, 0, 1, 1], [], []>} : vector<4x4xf32>, vector<4x256xf32>, vector<4x256xf32> -> vector<4x256xf32>
    %167 = arith.addf %162, %166 : vector<4x256xf32>
    %c8_87 = arith.constant 8 : index
    %c0_88 = arith.constant 0 : index
    %c0_89 = arith.constant 0 : index
    %168 = vector.load %arg4[%c8_87, %c0_88, %c0_89] : memref<9x4x4xf32, #tpu.memory_space<vmem>>, vector<1x4x4xf32>
    %169 = vector.shape_cast %168 : vector<1x4x4xf32> to vector<4x4xf32>
    %170 = vector.extract_strided_slice %115 {offsets = [0, 34], sizes = [4, 256], strides = [1, 1]} : vector<4x290xf32> to vector<4x256xf32>
    %cst_90 = arith.constant dense<0.000000e+00> : vector<4x256xf32>
    %171 = tpu.matmul %169, %170, %cst_90 {dimension_numbers = #tpu.dot_dimension_numbers<[1], [0], [0], [1], [0, 0, 1, 1], [], []>} : vector<4x4xf32>, vector<4x256xf32>, vector<4x256xf32> -> vector<4x256xf32>
    %172 = arith.addf %167, %171 : vector<4x256xf32>
    %c14_i32_91 = arith.constant 14 : i32
    %173 = vector.broadcast %c14_i32_91 : i32 to vector<1x256xi32>
    %174 = arith.cmpi sle, %42, %173 : vector<1x256xi32>
    %cst_92 = arith.constant 0.000000e+00 : f32
    %175 = vector.shape_cast %174 : vector<1x256xi1> to vector<1x256xi1>
    %176 = vector.broadcast %175 : vector<1x256xi1> to vector<4x256xi1>
    %177 = vector.broadcast %cst_92 : f32 to vector<4x256xf32>
    %178 = arith.select %176, %172, %177 : vector<4x256xi1>, vector<4x256xf32>
    %179 = arith.addf %156, %178 : vector<4x256xf32>
    %c0_93 = arith.constant 0 : index
    %c0_94 = arith.constant 0 : index
    %180 = vector.load %arg5[%c0_93, %c0_94] : memref<4x1xf32, #tpu.memory_space<vmem>>, vector<4x1xf32>
    %181 = vector.broadcast %180 : vector<4x1xf32> to vector<4x256xf32>
    %182 = arith.addf %179, %181 : vector<4x256xf32>
    %183 = vector.extract_strided_slice %1 {offsets = [0, 34], sizes = [4, 256], strides = [1, 1]} : vector<4x324xf32> to vector<4x256xf32>
    %184 = arith.addf %182, %183 : vector<4x256xf32>
    %185 = vector.shape_cast %184 : vector<4x256xf32> to vector<1x4x256xf32>
    %c0_95 = arith.constant 0 : index
    %c0_96 = arith.constant 0 : index
    %c0_97 = arith.constant 0 : index
    %186 = vector.load %arg6[%c0_95, %c0_96, %c0_97] : memref<1x4x256xf32, #tpu.memory_space<vmem>>, vector<1x4x256xf32>
    tpu.vector_store %arg6[%c0_95, %c0_96, %c0_97], %185 {strides = array<i32>} : memref<1x4x256xf32, #tpu.memory_space<vmem>>, vector<1x4x256xf32>,
    return
  }
  func.func @transform_0(%arg0: i32) -> (i32, i32, i32) {
    %c0_i32 = arith.constant 0 : i32
    %c0_i32_0 = arith.constant 0 : i32
    %c0_i32_1 = arith.constant 0 : i32
    return %arg0, %c0_i32, %c0_i32_0 : i32, i32, i32
  }
  func.func @transform_1(%arg0: i32) -> (i32, i32, i32) {
    %c0_i32 = arith.constant 0 : i32
    %c0_i32_0 = arith.constant 0 : i32
    %c0_i32_1 = arith.constant 0 : i32
    %c0_i32_2 = arith.constant 0 : i32
    return %c0_i32, %c0_i32_0, %c0_i32_1 : i32, i32, i32
  }
  func.func @transform_2(%arg0: i32) -> (i32, i32) {
    %c0_i32 = arith.constant 0 : i32
    %c0_i32_0 = arith.constant 0 : i32
    %c0_i32_1 = arith.constant 0 : i32
    return %c0_i32, %c0_i32_0 : i32, i32
  }
  func.func @transform_3(%arg0: i32) -> (i32, i32, i32) {
    %c0_i32 = arith.constant 0 : i32
    %c0_i32_0 = arith.constant 0 : i32
    %c0_i32_1 = arith.constant 0 : i32
    %c0_i32_2 = arith.constant 0 : i32
    return %c0_i32, %c0_i32_0, %c0_i32_1 : i32, i32, i32
  }
  func.func @transform_4(%arg0: i32) -> (i32, i32) {
    %c0_i32 = arith.constant 0 : i32
    %c0_i32_0 = arith.constant 0 : i32
    %c0_i32_1 = arith.constant 0 : i32
    return %c0_i32, %c0_i32_0 : i32, i32
  }
  func.func @transform_5(%arg0: i32) -> (i32, i32, i32) {
    %c0_i32 = arith.constant 0 : i32
    %c0_i32_0 = arith.constant 0 : i32
    %c0_i32_1 = arith.constant 0 : i32
    return %arg0, %c0_i32, %c0_i32_0 : i32, i32, i32
  }
}

</mosaic_0001>

<llo_original>
// kernel: tpu_custom_call.1
$region0: #{tpu_custom_call.1}
  #allocation0 [shape = 'u32[]', space=smem, size = 0x4, offset = 0x4, fixed_abs, tag = 'smem constant byte address 0x4 - core index']
  #allocation1 [shape = 'u32[144,128]{1,0:T(1,128)}', space=vmem, size = 0x12000, scoped, tag = 'internal scratch']
  %s0 = inlined_call_operand.vmem [shape: f32[2,4,324], index: 0, kind: input, shape index: {}]
  %s1 = inlined_call_operand.vmem [shape: f32[9,4,4], index: 1, kind: input, shape index: {}]
  %s2 = inlined_call_operand.vmem [shape: f32[4,1], index: 2, kind: input, shape index: {}]
  %s3 = inlined_call_operand.vmem [shape: f32[9,4,4], index: 3, kind: input, shape index: {}]
  %s4 = inlined_call_operand.vmem [shape: f32[4,1], index: 4, kind: input, shape index: {}]
  %s5 = inlined_call_operand.hbm [shape: f32[2,4,256], index: 5, kind: output, shape index: {}]
  %s6 = sld [smem:[#allocation0]]
  $region53: #{tpu_custom_call.1} parent=0
    _
  %s8 = ssub.s32 1, %s6
  %s9 = scalar_select 0, %s8, %s6
  $region1: #{tpu_custom_call.1} parent=0
    #allocation2 [shape = 'u8[8192]{0}', space=vmem, size = 0x2000, scoped, tag = 'output window, operand 0']
    #allocation3 [shape = 's32[2]{0}', space=sflag, size = 0x8, scoped, tag = 'scoped memory for tpu_custom_call.1']
    %10 = vsyncpa [#allocation3], 0
    %s11 = scalar_lea.sflag [#allocation3], 1
    %12 = vsyncpa %s11, 0
    loop: start=0, step=1, limit=4
    $region2: #{tpu_custom_call.1} parent=1 // loop_pre_header
      _
    $region3: #{tpu_custom_call.1} parent=1 // loop_header
      %s14 = sphi 0, %s18
      %p15 = scmp.ge.s32.totalorder %s14, 4
      %s24 = sphi 0, %s26
      %s27 = sphi 0, %s24
      %s28 = sphi 0, %s27
      %s44 = sphi 0, %s28
      %s48 = sphi 0, %s48
      %s50 = sphi 0, %s48
      %s51 = sphi 0, %s50
      %s65 = sphi 0, %s51
      %s69 = sphi 0, %s69
      %s71 = sphi 0, %s69
      %s72 = sphi 0, %s71
      %s86 = sphi 0, %s72
      %s90 = sphi 0, %s90
      %s92 = sphi 0, %s90
      %s93 = sphi 0, %s92
      %s107 = sphi 0, %s93
      %s111 = sphi 0, %s111
      %s113 = sphi 0, %s111
      %s114 = sphi 0, %s113
      %s128 = sphi 0, %s114
      %s134 = sphi 0, %s136
      %s137 = sphi 0, %s134
      %s138 = sphi 0, %s137
      %s154 = sphi 0, %s138
    $region4: #{tpu_custom_call.1} parent=1 // loop_header_branch
      %17 = sbr.rel (%p15) target = $region8
    $region5: #{tpu_custom_call.1} parent=1 // loop_body
      %s19 = ssub.s32 %s14, 1
      %s20 = ssub.s32 %s14, 2
      %s21 = sadd.s32 %s14, 1
      %s22 = ssub.s32 %s14, %s21
      %p23 = scmp.eq.s32.totalorder %s22, 0
      %s25 = sadd.s32 %s24, 1
      %s26 = scalar_select %p23, %s24, %s25
      %p29 = pneg %p23
      %p30 = scmp.eq.s32.totalorder %s14, 1
      %p31 = por %p29, %p30
      %p32 = scmp.ne.s32.totalorder %s24, %s27
      %p33 = scmp.eq.s32.totalorder %s14, 0
      %p34 = por %p32, %p33
      %p35 = scmp.ne.s32.totalorder %s24, %s27
      %p36 = scmp.eq.s32.totalorder %s19, 1
      %p37 = por %p35, %p36
      %p38 = scmp.ne.s32.totalorder %s27, %s28
      %p39 = scmp.eq.s32.totalorder %s19, 0
      %p40 = por %p38, %p39
      %p41 = scmp.ne.s32.totalorder %s27, %s28
      %p42 = scmp.eq.s32.totalorder %s20, 1
      %p43 = por %p41, %p42
      %p45 = scmp.ne.s32.totalorder %s28, %s44
      %p46 = scmp.eq.s32.totalorder %s20, 0
      %p47 = por %p45, %p46
      %s49 = sadd.s32 %s48, 1
      %p52 = scmp.eq.s32.totalorder %s14, 1
      %p53 = scmp.ne.s32.totalorder %s48, %s50
      %p54 = scmp.eq.s32.totalorder %s14, 0
      %p55 = por %p53, %p54
      %p56 = scmp.ne.s32.totalorder %s48, %s50
      %p57 = scmp.eq.s32.totalorder %s19, 1
      %p58 = por %p56, %p57
      %p59 = scmp.ne.s32.totalorder %s50, %s51
      %p60 = scmp.eq.s32.totalorder %s19, 0
      %p61 = por %p59, %p60
      %p62 = scmp.ne.s32.totalorder %s50, %s51
      %p63 = scmp.eq.s32.totalorder %s20, 1
      %p64 = por %p62, %p63
      %p66 = scmp.ne.s32.totalorder %s51, %s65
      %p67 = scmp.eq.s32.totalorder %s20, 0
      %p68 = por %p66, %p67
      %s70 = sadd.s32 %s69, 1
      %p73 = scmp.eq.s32.totalorder %s14, 1
      %p74 = scmp.ne.s32.totalorder %s69, %s71
      %p75 = scmp.eq.s32.totalorder %s14, 0
      %p76 = por %p74, %p75
      %p77 = scmp.ne.s32.totalorder %s69, %s71
      %p78 = scmp.eq.s32.totalorder %s19, 1
      %p79 = por %p77, %p78
      %p80 = scmp.ne.s32.totalorder %s71, %s72
      %p81 = scmp.eq.s32.totalorder %s19, 0
      %p82 = por %p80, %p81
      %p83 = scmp.ne.s32.totalorder %s71, %s72
      %p84 = scmp.eq.s32.totalorder %s20, 1
      %p85 = por %p83, %p84
      %p87 = scmp.ne.s32.totalorder %s72, %s86
      %p88 = scmp.eq.s32.totalorder %s20, 0
      %p89 = por %p87, %p88
      %s91 = sadd.s32 %s90, 1
      %p94 = scmp.eq.s32.totalorder %s14, 1
      %p95 = scmp.ne.s32.totalorder %s90, %s92
      %p96 = scmp.eq.s32.totalorder %s14, 0
      %p97 = por %p95, %p96
      %p98 = scmp.ne.s32.totalorder %s90, %s92
      %p99 = scmp.eq.s32.totalorder %s19, 1
      %p100 = por %p98, %p99
      %p101 = scmp.ne.s32.totalorder %s92, %s93
      %p102 = scmp.eq.s32.totalorder %s19, 0
      %p103 = por %p101, %p102
      %p104 = scmp.ne.s32.totalorder %s92, %s93
      %p105 = scmp.eq.s32.totalorder %s20, 1
      %p106 = por %p104, %p105
      %p108 = scmp.ne.s32.totalorder %s93, %s107
      %p109 = scmp.eq.s32.totalorder %s20, 0
      %p110 = por %p108, %p109
      %s112 = sadd.s32 %s111, 1
      %p115 = scmp.eq.s32.totalorder %s14, 1
      %p116 = scmp.ne.s32.totalorder %s111, %s113
      %p117 = scmp.eq.s32.totalorder %s14, 0
      %p118 = por %p116, %p117
      %p119 = scmp.ne.s32.totalorder %s111, %s113
      %p120 = scmp.eq.s32.totalorder %s19, 1
      %p121 = por %p119, %p120
      %p122 = scmp.ne.s32.totalorder %s113, %s114
      %p123 = scmp.eq.s32.totalorder %s19, 0
      %p124 = por %p122, %p123
      %p125 = scmp.ne.s32.totalorder %s113, %s114
      %p126 = scmp.eq.s32.totalorder %s20, 1
      %p127 = por %p125, %p126
      %p129 = scmp.ne.s32.totalorder %s114, %s128
      %p130 = scmp.eq.s32.totalorder %s20, 0
      %p131 = por %p129, %p130
      %s132 = ssub.s32 %s14, %s21
      %p133 = scmp.eq.s32.totalorder %s132, 0
      %s135 = sadd.s32 %s134, 1
      %s136 = scalar_select %p133, %s134, %s135
      %p139 = pneg %p133
      %p140 = scmp.eq.s32.totalorder %s14, 1
      %p141 = por %p139, %p140
      %p142 = scmp.ne.s32.totalorder %s134, %s137
      %p143 = scmp.eq.s32.totalorder %s14, 0
      %p144 = por %p142, %p143
      %p145 = scmp.ne.s32.totalorder %s134, %s137
      %p146 = scmp.eq.s32.totalorder %s19, 1
      %p147 = por %p145, %p146
      %p148 = scmp.ne.s32.totalorder %s137, %s138
      %p149 = scmp.eq.s32.totalorder %s19, 0
      %p150 = por %p148, %p149
      %p151 = scmp.ne.s32.totalorder %s137, %s138
      %p152 = scmp.eq.s32.totalorder %s20, 1
      %p153 = por %p151, %p152
      %p155 = scmp.ne.s32.totalorder %s138, %s154
      %p156 = scmp.eq.s32.totalorder %s20, 0
      %p157 = por %p155, %p156
      %p158 = scmp.le.s32.totalorder 1, %s14
      %p159 = scmp.lt.s32.totalorder %s14, 3
      %p160 = pnand %p158, %p159
      %p161 = pneg %p160
      // Predicated region
      $region9: #{tpu_custom_call.1} parent=5 // pred_check
        _
      $region10: #{tpu_custom_call.1} parent=5 // pred_check_branch
        %163 = sbr.rel (%p160) target = $region12
      $region11: #{tpu_custom_call.1} parent=5 // pred_region
        %s164 = ssub.s32 %s14, 1
        // Predicated region
        $region13: #{tpu_custom_call.1} parent=11 // pred_check
          %p165 = pneg %p61
        $region14: #{tpu_custom_call.1} parent=11 // pred_check_branch
          %167 = sbr.rel (%p165) target = $region16
        $region15: #{tpu_custom_call.1} parent=11 // pred_region
          _
        $region16: #{tpu_custom_call.1} parent=11 // pred_fallthru
          _
        // Predicated region
        $region17: #{tpu_custom_call.1} parent=11 // pred_check
          %p168 = pneg %p82
        $region18: #{tpu_custom_call.1} parent=11 // pred_check_branch
          %170 = sbr.rel (%p168) target = $region20
        $region19: #{tpu_custom_call.1} parent=11 // pred_region
          _
        $region20: #{tpu_custom_call.1} parent=11 // pred_fallthru
          _
        // Predicated region
        $region21: #{tpu_custom_call.1} parent=11 // pred_check
          %p171 = pneg %p103
        $region22: #{tpu_custom_call.1} parent=11 // pred_check_branch
          %173 = sbr.rel (%p171) target = $region24
        $region23: #{tpu_custom_call.1} parent=11 // pred_region
          _
        $region24: #{tpu_custom_call.1} parent=11 // pred_fallthru
          _
        // Predicated region
        $region25: #{tpu_custom_call.1} parent=11 // pred_check
          %p174 = pneg %p124
        $region26: #{tpu_custom_call.1} parent=11 // pred_check_branch
          %176 = sbr.rel (%p174) target = $region28
        $region27: #{tpu_custom_call.1} parent=11 // pred_region
          _
        $region28: #{tpu_custom_call.1} parent=11 // pred_fallthru
          _
      $region12: #{tpu_custom_call.1} parent=5 // pred_fallthru
        _
      %p177 = scmp.lt.s32.totalorder %s14, 2
      // Predicated region
      $region29: #{tpu_custom_call.1} parent=5 // pred_check
        %p178 = pneg %p177
      $region30: #{tpu_custom_call.1} parent=5 // pred_check_branch
        %180 = sbr.rel (%p178) target = $region32
      $region31: #{tpu_custom_call.1} parent=5 // pred_region
        // Predicated region
        $region33: #{tpu_custom_call.1} parent=31 // pred_check
          %p181 = pneg %p34
        $region34: #{tpu_custom_call.1} parent=31 // pred_check_branch
          %183 = sbr.rel (%p181) target = $region36
        $region35: #{tpu_custom_call.1} parent=31 // pred_region
          %p184 = scmp.lt.s32.totalorder %s14, 1
          %s185 = scalar_select %p184, %s14, 1
          %s186 = smul.addr %s185, 3
          %s187 = smul.addr %s186, 4
          %s188 = scalar_lea.vmem %s0, %s187
        $region36: #{tpu_custom_call.1} parent=31 // pred_fallthru
          _
      $region32: #{tpu_custom_call.1} parent=5 // pred_fallthru
        _
      %p189 = scmp.le.s32.totalorder 1, %s14
      %p190 = scmp.lt.s32.totalorder %s14, 3
      %p191 = pnand %p189, %p190
      %p192 = pneg %p191
      // Predicated region
      $region37: #{tpu_custom_call.1} parent=5 // pred_check
        _
      $region38: #{tpu_custom_call.1} parent=5 // pred_check_branch
        %194 = sbr.rel (%p191) target = $region40
      $region39: #{tpu_custom_call.1} parent=5 // pred_region
        %s195 = ssub.s32 %s14, 1
        %p196 = scmp.lt.s32.totalorder %s19, 1
        %s197 = scalar_select %p196, %s19, 1
        %s198 = smul.addr %s197, 3
        %s199 = smul.addr %s198, 4
        %s200 = scalar_lea.vmem %s0, %s199
        %p201 = pneg %p40
        %p202 = pneg %p37
        %p203 = pneg %p61
        %p204 = pneg %p58
        %p205 = pneg %p82
        %p206 = pneg %p79
        %p207 = pneg %p103
        %p208 = pneg %p100
        %p209 = pneg %p124
        %p210 = pneg %p121
        %p211 = pneg %p150
        %p212 = pneg %p147
        %s213 = sand.u32 %s137, 1
        %s214 = scalar_lea.sflag [#allocation3], %s213
        %s215 = sand.u32 %s137, 1
        %s216 = smul.addr %s215, 8
        %s217 = scalar_lea.vmem [#allocation2], %s216
        %p218 = scmp.lt.s32.totalorder %s19, 1
        %s219 = scalar_select %p218, %s19, 1
        %s220 = smul.addr %s219, 3
        %s221 = smul.addr %s220, 4
        %s222 = scalar_lea.vmem %s0, %s221
        %v223 = vld [vmem:[%s222] sm:$0xff]
        %v224 = vld [vmem:[%s222 + $0x8] sm:$0xf]
        %v225 = vlaneseq
        %v226 = vand.u32 %v225, 127
        %v227 = vadd.s32 %v226, 128
        %v228 = vadd.s32 %v226, 256
        %v229 = vadd.s32 %v226, 15
        %v230 = vadd.s32 %v227, 15
        %v231 = vadd.s32 %v228, 15
        %vm232 = vcmp.lt.s32.totalorder %v229, 0
        %v233 = vsub.s32 0, %v229
        %v234 = vsel %vm232, %v233, %v229
        %v235 = vshrl.u32 %v234, 4
        %v236 = vand.u32 %v234, 15
        %v237 = vsub.s32 0, %v236
        %v238 = vsel %vm232, %v237, %v236
        %vm239 = vcmp.lt.s32.totalorder %v230, 0
        %v240 = vsub.s32 0, %v230
        %v241 = vsel %vm239, %v240, %v230
        %v242 = vshrl.u32 %v241, 4
        %v243 = vand.u32 %v241, 15
        %v244 = vsub.s32 0, %v243
        %v245 = vsel %vm239, %v244, %v243
        %vm246 = vcmp.lt.s32.totalorder %v231, 0
        %v247 = vsub.s32 0, %v231
        %v248 = vsel %vm246, %v247, %v231
        %v249 = vshrl.u32 %v248, 4
        %v250 = vand.u32 %v248, 15
        %v251 = vsub.s32 0, %v250
        %v252 = vsel %vm246, %v251, %v250
        %vm253 = vcmp.ne.s32.totalorder %v238, 0
        %vm254 = vcmp.ne.s32.totalorder %v245, 0
        %vm255 = vcmp.ne.s32.totalorder %v252, 0
        %vm256 = vcmp.lt.s32.totalorder %v238, 0
        %vm257 = vcmp.lt.s32.totalorder %v245, 0
        %vm258 = vcmp.lt.s32.totalorder %v252, 0
        %vm259 = vmand %vm256, %vm253
        %vm260 = vmand %vm257, %vm254
        %vm261 = vmand %vm258, %vm255
        %v262 = vadd.s32 %v238, 16
        %v263 = vadd.s32 %v245, 16
        %v264 = vadd.s32 %v252, 16
        %v265 = vsel %vm259, %v262, %v238
        %v266 = vsel %vm260, %v263, %v245
        %v267 = vsel %vm261, %v264, %v252
        %vm268 = vcmp.ge.s32.totalorder %v226, 17
        %vm269 = vcmp.ge.s32.totalorder %v227, 17
        %vm270 = vcmp.ge.s32.totalorder %v228, 17
        %vm271 = vcmp.lt.s32.totalorder %v226, 273
        %vm272 = vcmp.lt.s32.totalorder %v227, 273
        %vm273 = vcmp.lt.s32.totalorder %v228, 273
        %vm274 = vmand %vm268, %vm271
        %vm275 = vmand %vm269, %vm272
        %vm276 = vmand %vm270, %vm273
        %vm277 = vcmp.lt.s32.totalorder %v226, 0
        %v278 = vsub.s32 0, %v226
        %v279 = vsel %vm277, %v278, %v226
        %v280 = vshrl.u32 %v279, 4
        %v281 = vand.u32 %v279, 15
        %v282 = vsub.s32 0, %v281
        %v283 = vsel %vm277, %v282, %v281
        %vm284 = vcmp.lt.s32.totalorder %v227, 0
        %v285 = vsub.s32 0, %v227
        %v286 = vsel %vm284, %v285, %v227
        %v287 = vshrl.u32 %v286, 4
        %v288 = vand.u32 %v286, 15
        %v289 = vsub.s32 0, %v288
        %v290 = vsel %vm284, %v289, %v288
        %vm291 = vcmp.ne.s32.totalorder %v283, 0
        %vm292 = vcmp.ne.s32.totalorder %v290, 0
        %vm293 = vcmp.lt.s32.totalorder %v283, 0
        %vm294 = vcmp.lt.s32.totalorder %v290, 0
        %vm295 = vmand %vm293, %vm291
        %vm296 = vmand %vm294, %vm292
        %v297 = vadd.s32 %v283, 16
        %v298 = vadd.s32 %v290, 16
        %v299 = vsel %vm295, %v297, %v283
        %v300 = vsel %vm296, %v298, %v290
        %v301 = vld [vmem:[%s1] sm:$0xf]
        %s302 = scalar_lea.vmem %s1, 12
        %v303 = vld [vmem:[%s302] sm:$0xf]
        %v306 = vcombine.high %v223, %v223
        %307 = vrot.lane.b32.xlu0 %v223, 112
        %v308 = vpop.permute.xlu0 %307
        %309 = vrot.lane.b32.xlu0 %v306, 112
        %v310 = vpop.permute.xlu0 %309
        %311 = vrot.lane.b32.xlu0 %v224, 112
        %v312 = vpop.permute.xlu0 %311
        %vm313 = vcmask 916480
        %v314 = vsel %vm313, %v308, %v310
        %v315 = vsel %vm313, %v310, %v312
        %vm316 = vcmask 31744
        %v318 = vsel %vm316, %v303, 0
        %vm320 = vcmask 1043456
        %v321 = vsel %vm320, %v314, 0
        %v323 = vsel %vm320, %v315, 0
        %v325 = vsel %vm320, %v312, 0
        %327 = vmatprep.subr.mxu0 %v323
        %328 = vmatpush1.msra.mxu0 %v321
        %329 = vmatprep.subr.mxu0 0.0
        %330 = vmatpush1.msra.mxu0 0.0
        %331 = vmatprep.subr.mxu0 0.0
        %332 = vmatpush1.msra.mxu0 0.0
        %333 = vmatprep.subr.mxu0 0.0
        %334 = vmatpush1.msra.mxu0 0.0
        %335 = vmatprep.subr.mxu0 0.0
        %336 = vmatpush1.msra.mxu0 0.0
        %337 = vmatprep.subr.mxu0 0.0
        %338 = vmatpush1.msra.mxu0 0.0
        %339 = vmatprep.subr.mxu0 0.0
        %340 = vmatpush1.msra.mxu0 0.0
        %341 = vmatprep.subr.mxu0 0.0
        %342 = vmatpush1.msra.mxu0 0.0
        %343 = vmatprep.subr.mxu0 0.0
        %344 = vmatpush1.msra.mxu0 0.0
        %345 = vmatprep.subr.mxu0 0.0
        %346 = vmatpush1.msra.mxu0 0.0
        %347 = vmatprep.subr.mxu0 0.0
        %348 = vmatpush1.msra.mxu0 0.0
        %349 = vmatprep.subr.mxu0 0.0
        %350 = vmatpush1.msra.mxu0 0.0
        %351 = vmatprep.subr.mxu0 0.0
        %352 = vmatpush1.msra.mxu0 0.0
        %353 = vmatprep.subr.mxu0 0.0
        %354 = vmatpush1.msra.mxu0 0.0
        %355 = vmatprep.subr.mxu0 0.0
        %356 = vmatpush1.msra.mxu0 0.0
        %357 = vmatprep.subr.mxu0 0.0
        %358 = vmatpush1.msra.mxu0 0.0
        %359 = vmatprep.subr.mxu0 0.0
        %360 = vmatpush1.msra.mxu0 0.0
        %361 = vmatprep.subr.mxu0 0.0
        %362 = vmatpush1.msra.mxu0 0.0
        %363 = vmatprep.subr.mxu0 0.0
        %364 = vmatpush1.msra.mxu0 0.0
        %365 = vmatprep.subr.mxu0 0.0
        %366 = vmatpush1.msra.mxu0 0.0
        %367 = vmatprep.subr.mxu0 0.0
        %368 = vmatpush1.msra.mxu0 0.0
        %369 = vmatprep.subr.mxu0 0.0
        %370 = vmatpush1.msra.mxu0 0.0
        %371 = vmatprep.subr.mxu0 0.0
        %372 = vmatpush1.msra.mxu0 0.0
        %373 = vmatprep.subr.mxu0 0.0
        %374 = vmatpush1.msra.mxu0 0.0
        %375 = vmatprep.subr.mxu0 0.0
        %376 = vmatpush1.msra.mxu0 0.0
        %377 = vmatprep.subr.mxu0 0.0
        %378 = vmatpush1.msra.mxu0 0.0
        %379 = vmatprep.subr.mxu0 0.0
        %380 = vmatpush1.msra.mxu0 0.0
        %381 = vmatprep.subr.mxu0 0.0
        %382 = vmatpush1.msra.mxu0 0.0
        %383 = vmatprep.subr.mxu0 0.0
        %384 = vmatpush1.msra.mxu0 0.0
        %385 = vmatprep.subr.mxu0 0.0
        %386 = vmatpush1.msra.mxu0 0.0
        %387 = vmatprep.subr.mxu0 0.0
        %388 = vmatpush1.msra.mxu0 0.0
        %389 = vmatprep.subr.mxu0 0.0
        %390 = vmatpush1.msra.mxu0 0.0
        %391 = vmatprep.mubr.f32.mxu0 0.0
        %392 = vmatmul.mubr.f32.gmra.mrb[0].mxu0 %v318
        %v393 = vpop.f32.mrb[0].mxu0
        %v394 = vadd.f32 0.0, %v393
        %v395 = vpop.f32.mrb[0].mxu0
        %v396 = vadd.f32 0.0, %v395
        %397 = vdwg.mxu0
        %398 = vmatprep.subr.mxu0 0.0
        %399 = vmatpush1.msra.mxu0 %v325
        %400 = vmatprep.subr.mxu0 0.0
        %401 = vmatpush1.msra.mxu0 0.0
        %402 = vmatprep.subr.mxu0 0.0
        %403 = vmatpush1.msra.mxu0 0.0
        %404 = vmatprep.subr.mxu0 0.0
        %405 = vmatpush1.msra.mxu0 0.0
        %406 = vmatprep.subr.mxu0 0.0
        %407 = vmatpush1.msra.mxu0 0.0
        %408 = vmatprep.subr.mxu0 0.0
        %409 = vmatpush1.msra.mxu0 0.0
        %410 = vmatprep.subr.mxu0 0.0
        %411 = vmatpush1.msra.mxu0 0.0
        %412 = vmatprep.subr.mxu0 0.0
        %413 = vmatpush1.msra.mxu0 0.0
        %414 = vmatprep.subr.mxu0 0.0
        %415 = vmatpush1.msra.mxu0 0.0
        %416 = vmatprep.subr.mxu0 0.0
        %417 = vmatpush1.msra.mxu0 0.0
        %418 = vmatprep.subr.mxu0 0.0
        %419 = vmatpush1.msra.mxu0 0.0
        %420 = vmatprep.subr.mxu0 0.0
        %421 = vmatpush1.msra.mxu0 0.0
        %422 = vmatprep.subr.mxu0 0.0
        %423 = vmatpush1.msra.mxu0 0.0
        %424 = vmatprep.subr.mxu0 0.0
        %425 = vmatpush1.msra.mxu0 0.0
        %426 = vmatprep.subr.mxu0 0.0
        %427 = vmatpush1.msra.mxu0 0.0
        %428 = vmatprep.subr.mxu0 0.0
        %429 = vmatpush1.msra.mxu0 0.0
        %430 = vmatprep.subr.mxu0 0.0
        %431 = vmatpush1.msra.mxu0 0.0
        %432 = vmatprep.subr.mxu0 0.0
        %433 = vmatpush1.msra.mxu0 0.0
        %434 = vmatprep.subr.mxu0 0.0
        %435 = vmatpush1.msra.mxu0 0.0
        %436 = vmatprep.subr.mxu0 0.0
        %437 = vmatpush1.msra.mxu0 0.0
        %438 = vmatprep.subr.mxu0 0.0
        %439 = vmatpush1.msra.mxu0 0.0
        %440 = vmatprep.subr.mxu0 0.0
        %441 = vmatpush1.msra.mxu0 0.0
        %442 = vmatprep.subr.mxu0 0.0
        %443 = vmatpush1.msra.mxu0 0.0
        %444 = vmatprep.subr.mxu0 0.0
        %445 = vmatpush1.msra.mxu0 0.0
        %446 = vmatprep.subr.mxu0 0.0
        %447 = vmatpush1.msra.mxu0 0.0
        %448 = vmatprep.subr.mxu0 0.0
        %449 = vmatpush1.msra.mxu0 0.0
        %450 = vmatprep.subr.mxu0 0.0
        %451 = vmatpush1.msra.mxu0 0.0
        %452 = vmatprep.subr.mxu0 0.0
        %453 = vmatpush1.msra.mxu0 0.0
        %454 = vmatprep.subr.mxu0 0.0
        %455 = vmatpush1.msra.mxu0 0.0
        %456 = vmatprep.subr.mxu0 0.0
        %457 = vmatpush1.msra.mxu0 0.0
        %458 = vmatprep.subr.mxu0 0.0
        %459 = vmatpush1.msra.mxu0 0.0
        %460 = vmatprep.subr.mxu0 0.0
        %461 = vmatpush1.msra.mxu0 0.0
        %462 = vmatprep.mubr.f32.mxu0 0.0
        %463 = vmatmul.mubr.f32.gmra.mrb[0].mxu0 %v318
        %v464 = vpop.f32.mrb[0].mxu0
        %v465 = vadd.f32 0.0, %v464
        %v466 = vpop.f32.mrb[0].mxu0
        %467 = vdwg.mxu0
        %v469 = vsel %vm316, %v301, 0
        %v471 = vsel %vm320, %v223, 0
        %v473 = vsel %vm320, %v306, 0
        %v475 = vsel %vm320, %v224, 0
        %477 = vmatprep.subr.mxu0 %v473
        %478 = vmatpush1.msra.mxu0 %v471
        %479 = vmatprep.subr.mxu0 0.0
        %480 = vmatpush1.msra.mxu0 0.0
        %481 = vmatprep.subr.mxu0 0.0
        %482 = vmatpush1.msra.mxu0 0.0
        %483 = vmatprep.subr.mxu0 0.0
        %484 = vmatpush1.msra.mxu0 0.0
        %485 = vmatprep.subr.mxu0 0.0
        %486 = vmatpush1.msra.mxu0 0.0
        %487 = vmatprep.subr.mxu0 0.0
        %488 = vmatpush1.msra.mxu0 0.0
        %489 = vmatprep.subr.mxu0 0.0
        %490 = vmatpush1.msra.mxu0 0.0
        %491 = vmatprep.subr.mxu0 0.0
        %492 = vmatpush1.msra.mxu0 0.0
        %493 = vmatprep.subr.mxu0 0.0
        %494 = vmatpush1.msra.mxu0 0.0
        %495 = vmatprep.subr.mxu0 0.0
        %496 = vmatpush1.msra.mxu0 0.0
        %497 = vmatprep.subr.mxu0 0.0
        %498 = vmatpush1.msra.mxu0 0.0
        %499 = vmatprep.subr.mxu0 0.0
        %500 = vmatpush1.msra.mxu0 0.0
        %501 = vmatprep.subr.mxu0 0.0
        %502 = vmatpush1.msra.mxu0 0.0
        %503 = vmatprep.subr.mxu0 0.0
        %504 = vmatpush1.msra.mxu0 0.0
        %505 = vmatprep.subr.mxu0 0.0
        %506 = vmatpush1.msra.mxu0 0.0
        %507 = vmatprep.subr.mxu0 0.0
        %508 = vmatpush1.msra.mxu0 0.0
        %509 = vmatprep.subr.mxu0 0.0
        %510 = vmatpush1.msra.mxu0 0.0
        %511 = vmatprep.subr.mxu0 0.0
        %512 = vmatpush1.msra.mxu0 0.0
        %513 = vmatprep.subr.mxu0 0.0
        %514 = vmatpush1.msra.mxu0 0.0
        %515 = vmatprep.subr.mxu0 0.0
        %516 = vmatpush1.msra.mxu0 0.0
        %517 = vmatprep.subr.mxu0 0.0
        %518 = vmatpush1.msra.mxu0 0.0
        %519 = vmatprep.subr.mxu0 0.0
        %520 = vmatpush1.msra.mxu0 0.0
        %521 = vmatprep.subr.mxu0 0.0
        %522 = vmatpush1.msra.mxu0 0.0
        %523 = vmatprep.subr.mxu0 0.0
        %524 = vmatpush1.msra.mxu0 0.0
        %525 = vmatprep.subr.mxu0 0.0
        %526 = vmatpush1.msra.mxu0 0.0
        %527 = vmatprep.subr.mxu0 0.0
        %528 = vmatpush1.msra.mxu0 0.0
        %529 = vmatprep.subr.mxu0 0.0
        %530 = vmatpush1.msra.mxu0 0.0
        %531 = vmatprep.subr.mxu0 0.0
        %532 = vmatpush1.msra.mxu0 0.0
        %533 = vmatprep.subr.mxu0 0.0
        %534 = vmatpush1.msra.mxu0 0.0
        %535 = vmatprep.subr.mxu0 0.0
        %536 = vmatpush1.msra.mxu0 0.0
        %537 = vmatprep.subr.mxu0 0.0
        %538 = vmatpush1.msra.mxu0 0.0
        %539 = vmatprep.subr.mxu0 0.0
        %540 = vmatpush1.msra.mxu0 0.0
        %541 = vmatprep.mubr.f32.mxu0 0.0
        %542 = vmatmul.mubr.f32.gmra.mrb[0].mxu0 %v469
        %v543 = vpop.f32.mrb[0].mxu0
        %v544 = vadd.f32 %v394, %v543
        %v545 = vpop.f32.mrb[0].mxu0
        %v546 = vadd.f32 %v396, %v545
        %547 = vdwg.mxu0
        %548 = vmatprep.subr.mxu0 0.0
        %549 = vmatpush1.msra.mxu0 %v475
        %550 = vmatprep.subr.mxu0 0.0
        %551 = vmatpush1.msra.mxu0 0.0
        %552 = vmatprep.subr.mxu0 0.0
        %553 = vmatpush1.msra.mxu0 0.0
        %554 = vmatprep.subr.mxu0 0.0
        %555 = vmatpush1.msra.mxu0 0.0
        %556 = vmatprep.subr.mxu0 0.0
        %557 = vmatpush1.msra.mxu0 0.0
        %558 = vmatprep.subr.mxu0 0.0
        %559 = vmatpush1.msra.mxu0 0.0
        %560 = vmatprep.subr.mxu0 0.0
        %561 = vmatpush1.msra.mxu0 0.0
        %562 = vmatprep.subr.mxu0 0.0
        %563 = vmatpush1.msra.mxu0 0.0
        %564 = vmatprep.subr.mxu0 0.0
        %565 = vmatpush1.msra.mxu0 0.0
        %566 = vmatprep.subr.mxu0 0.0
        %567 = vmatpush1.msra.mxu0 0.0
        %568 = vmatprep.subr.mxu0 0.0
        %569 = vmatpush1.msra.mxu0 0.0
        %570 = vmatprep.subr.mxu0 0.0
        %571 = vmatpush1.msra.mxu0 0.0
        %572 = vmatprep.subr.mxu0 0.0
        %573 = vmatpush1.msra.mxu0 0.0
        %574 = vmatprep.subr.mxu0 0.0
        %575 = vmatpush1.msra.mxu0 0.0
        %576 = vmatprep.subr.mxu0 0.0
        %577 = vmatpush1.msra.mxu0 0.0
        %578 = vmatprep.subr.mxu0 0.0
        %579 = vmatpush1.msra.mxu0 0.0
        %580 = vmatprep.subr.mxu0 0.0
        %581 = vmatpush1.msra.mxu0 0.0
        %582 = vmatprep.subr.mxu0 0.0
        %583 = vmatpush1.msra.mxu0 0.0
        %584 = vmatprep.subr.mxu0 0.0
        %585 = vmatpush1.msra.mxu0 0.0
        %586 = vmatprep.subr.mxu0 0.0
        %587 = vmatpush1.msra.mxu0 0.0
        %588 = vmatprep.subr.mxu0 0.0
        %589 = vmatpush1.msra.mxu0 0.0
        %590 = vmatprep.subr.mxu0 0.0
        %591 = vmatpush1.msra.mxu0 0.0
        %592 = vmatprep.subr.mxu0 0.0
        %593 = vmatpush1.msra.mxu0 0.0
        %594 = vmatprep.subr.mxu0 0.0
        %595 = vmatpush1.msra.mxu0 0.0
        %596 = vmatprep.subr.mxu0 0.0
        %597 = vmatpush1.msra.mxu0 0.0
        %598 = vmatprep.subr.mxu0 0.0
        %599 = vmatpush1.msra.mxu0 0.0
        %600 = vmatprep.subr.mxu0 0.0
        %601 = vmatpush1.msra.mxu0 0.0
        %602 = vmatprep.subr.mxu0 0.0
        %603 = vmatpush1.msra.mxu0 0.0
        %604 = vmatprep.subr.mxu0 0.0
        %605 = vmatpush1.msra.mxu0 0.0
        %606 = vmatprep.subr.mxu0 0.0
        %607 = vmatpush1.msra.mxu0 0.0
        %608 = vmatprep.subr.mxu0 0.0
        %609 = vmatpush1.msra.mxu0 0.0
        %610 = vmatprep.subr.mxu0 0.0
        %611 = vmatpush1.msra.mxu0 0.0
        %612 = vmatprep.mubr.f32.mxu0 0.0
        %613 = vmatmul.mubr.f32.gmra.mrb[0].mxu0 %v469
        %v614 = vpop.f32.mrb[0].mxu0
        %v615 = vadd.f32 %v465, %v614
        %v616 = vpop.f32.mrb[0].mxu0
        %617 = vdwg.mxu0
        %s618 = scalar_lea.vmem %s1, 24
        %v619 = vld [vmem:[%s618] sm:$0xf]
        %620 = vrot.lane.b32.xlu0 %v223, 96
        %v621 = vpop.permute.xlu0 %620
        %622 = vrot.lane.b32.xlu0 %v306, 96
        %v623 = vpop.permute.xlu0 %622
        %624 = vrot.lane.b32.xlu0 %v224, 96
        %v625 = vpop.permute.xlu0 %624
        %vm626 = vcmask 785408
        %v627 = vsel %vm626, %v621, %v623
        %v628 = vsel %vm626, %v623, %v625
        %v630 = vsel %vm316, %v619, 0
        %v632 = vsel %vm320, %v627, 0
        %v634 = vsel %vm320, %v628, 0
        %v636 = vsel %vm320, %v625, 0
        %638 = vmatprep.subr.mxu0 %v634
        %639 = vmatpush1.msra.mxu0 %v632
        %640 = vmatprep.subr.mxu0 0.0
        %641 = vmatpush1.msra.mxu0 0.0
        %642 = vmatprep.subr.mxu0 0.0
        %643 = vmatpush1.msra.mxu0 0.0
        %644 = vmatprep.subr.mxu0 0.0
        %645 = vmatpush1.msra.mxu0 0.0
        %646 = vmatprep.subr.mxu0 0.0
        %647 = vmatpush1.msra.mxu0 0.0
        %648 = vmatprep.subr.mxu0 0.0
        %649 = vmatpush1.msra.mxu0 0.0
        %650 = vmatprep.subr.mxu0 0.0
        %651 = vmatpush1.msra.mxu0 0.0
        %652 = vmatprep.subr.mxu0 0.0
        %653 = vmatpush1.msra.mxu0 0.0
        %654 = vmatprep.subr.mxu0 0.0
        %655 = vmatpush1.msra.mxu0 0.0
        %656 = vmatprep.subr.mxu0 0.0
        %657 = vmatpush1.msra.mxu0 0.0
        %658 = vmatprep.subr.mxu0 0.0
        %659 = vmatpush1.msra.mxu0 0.0
        %660 = vmatprep.subr.mxu0 0.0
        %661 = vmatpush1.msra.mxu0 0.0
        %662 = vmatprep.subr.mxu0 0.0
        %663 = vmatpush1.msra.mxu0 0.0
        %664 = vmatprep.subr.mxu0 0.0
        %665 = vmatpush1.msra.mxu0 0.0
        %666 = vmatprep.subr.mxu0 0.0
        %667 = vmatpush1.msra.mxu0 0.0
        %668 = vmatprep.subr.mxu0 0.0
        %669 = vmatpush1.msra.mxu0 0.0
        %670 = vmatprep.subr.mxu0 0.0
        %671 = vmatpush1.msra.mxu0 0.0
        %672 = vmatprep.subr.mxu0 0.0
        %673 = vmatpush1.msra.mxu0 0.0
        %674 = vmatprep.subr.mxu0 0.0
        %675 = vmatpush1.msra.mxu0 0.0
        %676 = vmatprep.subr.mxu0 0.0
        %677 = vmatpush1.msra.mxu0 0.0
        %678 = vmatprep.subr.mxu0 0.0
        %679 = vmatpush1.msra.mxu0 0.0
        %680 = vmatprep.subr.mxu0 0.0
        %681 = vmatpush1.msra.mxu0 0.0
        %682 = vmatprep.subr.mxu0 0.0
        %683 = vmatpush1.msra.mxu0 0.0
        %684 = vmatprep.subr.mxu0 0.0
        %685 = vmatpush1.msra.mxu0 0.0
        %686 = vmatprep.subr.mxu0 0.0
        %687 = vmatpush1.msra.mxu0 0.0
        %688 = vmatprep.subr.mxu0 0.0
        %689 = vmatpush1.msra.mxu0 0.0
        %690 = vmatprep.subr.mxu0 0.0
        %691 = vmatpush1.msra.mxu0 0.0
        %692 = vmatprep.subr.mxu0 0.0
        %693 = vmatpush1.msra.mxu0 0.0
        %694 = vmatprep.subr.mxu0 0.0
        %695 = vmatpush1.msra.mxu0 0.0
        %696 = vmatprep.subr.mxu0 0.0
        %697 = vmatpush1.msra.mxu0 0.0
        %698 = vmatprep.subr.mxu0 0.0
        %699 = vmatpush1.msra.mxu0 0.0
        %700 = vmatprep.subr.mxu0 0.0
        %701 = vmatpush1.msra.mxu0 0.0
        %702 = vmatprep.mubr.f32.mxu0 0.0
        %703 = vmatmul.mubr.f32.gmra.mrb[0].mxu0 %v630
        %v704 = vpop.f32.mrb[0].mxu0
        %v705 = vadd.f32 0.0, %v704
        %v706 = vpop.f32.mrb[0].mxu0
        %v707 = vadd.f32 0.0, %v706
        %708 = vdwg.mxu0
        %709 = vmatprep.subr.mxu0 0.0
        %710 = vmatpush1.msra.mxu0 %v636
        %711 = vmatprep.subr.mxu0 0.0
        %712 = vmatpush1.msra.mxu0 0.0
        %713 = vmatprep.subr.mxu0 0.0
        %714 = vmatpush1.msra.mxu0 0.0
        %715 = vmatprep.subr.mxu0 0.0
        %716 = vmatpush1.msra.mxu0 0.0
        %717 = vmatprep.subr.mxu0 0.0
        %718 = vmatpush1.msra.mxu0 0.0
        %719 = vmatprep.subr.mxu0 0.0
        %720 = vmatpush1.msra.mxu0 0.0
        %721 = vmatprep.subr.mxu0 0.0
        %722 = vmatpush1.msra.mxu0 0.0
        %723 = vmatprep.subr.mxu0 0.0
        %724 = vmatpush1.msra.mxu0 0.0
        %725 = vmatprep.subr.mxu0 0.0
        %726 = vmatpush1.msra.mxu0 0.0
        %727 = vmatprep.subr.mxu0 0.0
        %728 = vmatpush1.msra.mxu0 0.0
        %729 = vmatprep.subr.mxu0 0.0
        %730 = vmatpush1.msra.mxu0 0.0
        %731 = vmatprep.subr.mxu0 0.0
        %732 = vmatpush1.msra.mxu0 0.0
        %733 = vmatprep.subr.mxu0 0.0
        %734 = vmatpush1.msra.mxu0 0.0
        %735 = vmatprep.subr.mxu0 0.0
        %736 = vmatpush1.msra.mxu0 0.0
        %737 = vmatprep.subr.mxu0 0.0
        %738 = vmatpush1.msra.mxu0 0.0
        %739 = vmatprep.subr.mxu0 0.0
        %740 = vmatpush1.msra.mxu0 0.0
        %741 = vmatprep.subr.mxu0 0.0
        %742 = vmatpush1.msra.mxu0 0.0
        %743 = vmatprep.subr.mxu0 0.0
        %744 = vmatpush1.msra.mxu0 0.0
        %745 = vmatprep.subr.mxu0 0.0
        %746 = vmatpush1.msra.mxu0 0.0
        %747 = vmatprep.subr.mxu0 0.0
        %748 = vmatpush1.msra.mxu0 0.0
        %749 = vmatprep.subr.mxu0 0.0
        %750 = vmatpush1.msra.mxu0 0.0
        %751 = vmatprep.subr.mxu0 0.0
        %752 = vmatpush1.msra.mxu0 0.0
        %753 = vmatprep.subr.mxu0 0.0
        %754 = vmatpush1.msra.mxu0 0.0
        %755 = vmatprep.subr.mxu0 0.0
        %756 = vmatpush1.msra.mxu0 0.0
        %757 = vmatprep.subr.mxu0 0.0
        %758 = vmatpush1.msra.mxu0 0.0
        %759 = vmatprep.subr.mxu0 0.0
        %760 = vmatpush1.msra.mxu0 0.0
        %761 = vmatprep.subr.mxu0 0.0
        %762 = vmatpush1.msra.mxu0 0.0
        %763 = vmatprep.subr.mxu0 0.0
        %764 = vmatpush1.msra.mxu0 0.0
        %765 = vmatprep.subr.mxu0 0.0
        %766 = vmatpush1.msra.mxu0 0.0
        %767 = vmatprep.subr.mxu0 0.0
        %768 = vmatpush1.msra.mxu0 0.0
        %769 = vmatprep.subr.mxu0 0.0
        %770 = vmatpush1.msra.mxu0 0.0
        %771 = vmatprep.subr.mxu0 0.0
        %772 = vmatpush1.msra.mxu0 0.0
        %773 = vmatprep.mubr.f32.mxu0 0.0
        %774 = vmatmul.mubr.f32.gmra.mrb[0].mxu0 %v630
        %v775 = vpop.f32.mrb[0].mxu0
        %v776 = vadd.f32 0.0, %v775
        %v777 = vpop.f32.mrb[0].mxu0
        %778 = vdwg.mxu0
        %v779 = vadd.f32 %v544, %v705
        %v780 = vadd.f32 %v546, %v707
        %v781 = vadd.f32 %v615, %v776
        %vm782 = vcmp.ge.s32.totalorder %v265, 1
        %vm783 = vcmp.ge.s32.totalorder %v266, 1
        %vm784 = vcmp.ge.s32.totalorder %v267, 1
        %v785 = vsel %vm782, 1, 0
        %v786 = vsel %vm783, 1, 0
        %v787 = vsel %vm784, 1, 0
        %vm788 = vcmp.eq.s32.totalorder %v785, 1
        %vm789 = vcmp.eq.s32.totalorder %v786, 1
        %vm790 = vcmp.eq.s32.totalorder %v787, 1
        %v791 = vsel %vm788, %v779, 0.0
        %v792 = vsel %vm789, %v780, 0.0
        %v793 = vsel %vm790, %v781, 0.0
        %v794 = vadd.f32 %v791, 0.0
        %v795 = vadd.f32 %v792, 0.0
        %v796 = vadd.f32 %v793, 0.0
        %s797 = scalar_lea.vmem %s1, 4
        %v798 = vld [vmem:[%s797] sm:$0xf]
        %s799 = scalar_lea.vmem %s1, 16
        %v800 = vld [vmem:[%s799] sm:$0xf]
        %801 = vrot.lane.b32.xlu0 %v223, 111
        %v802 = vpop.permute.xlu0 %801
        %803 = vrot.lane.b32.xlu0 %v306, 111
        %v804 = vpop.permute.xlu0 %803
        %805 = vrot.lane.b32.xlu0 %v224, 111
        %v806 = vpop.permute.xlu0 %805
        %vm807 = vcmask 908288
        %v808 = vsel %vm807, %v802, %v804
        %v809 = vsel %vm807, %v804, %v806
        %v811 = vsel %vm316, %v800, 0
        %v813 = vsel %vm320, %v808, 0
        %v815 = vsel %vm320, %v809, 0
        %v817 = vsel %vm320, %v806, 0
        %819 = vmatprep.subr.mxu0 %v815
        %820 = vmatpush1.msra.mxu0 %v813
        %821 = vmatprep.subr.mxu0 0.0
        %822 = vmatpush1.msra.mxu0 0.0
        %823 = vmatprep.subr.mxu0 0.0
        %824 = vmatpush1.msra.mxu0 0.0
        %825 = vmatprep.subr.mxu0 0.0
        %826 = vmatpush1.msra.mxu0 0.0
        %827 = vmatprep.subr.mxu0 0.0
        %828 = vmatpush1.msra.mxu0 0.0
        %829 = vmatprep.subr.mxu0 0.0
        %830 = vmatpush1.msra.mxu0 0.0
        %831 = vmatprep.subr.mxu0 0.0
        %832 = vmatpush1.msra.mxu0 0.0
        %833 = vmatprep.subr.mxu0 0.0
        %834 = vmatpush1.msra.mxu0 0.0
        %835 = vmatprep.subr.mxu0 0.0
        %836 = vmatpush1.msra.mxu0 0.0
        %837 = vmatprep.subr.mxu0 0.0
        %838 = vmatpush1.msra.mxu0 0.0
        %839 = vmatprep.subr.mxu0 0.0
        %840 = vmatpush1.msra.mxu0 0.0
        %841 = vmatprep.subr.mxu0 0.0
        %842 = vmatpush1.msra.mxu0 0.0
        %843 = vmatprep.subr.mxu0 0.0
        %844 = vmatpush1.msra.mxu0 0.0
        %845 = vmatprep.subr.mxu0 0.0
        %846 = vmatpush1.msra.mxu0 0.0
        %847 = vmatprep.subr.mxu0 0.0
        %848 = vmatpush1.msra.mxu0 0.0
        %849 = vmatprep.subr.mxu0 0.0
        %850 = vmatpush1.msra.mxu0 0.0
        %851 = vmatprep.subr.mxu0 0.0
        %852 = vmatpush1.msra.mxu0 0.0
        %853 = vmatprep.subr.mxu0 0.0
        %854 = vmatpush1.msra.mxu0 0.0
        %855 = vmatprep.subr.mxu0 0.0
        %856 = vmatpush1.msra.mxu0 0.0
        %857 = vmatprep.subr.mxu0 0.0
        %858 = vmatpush1.msra.mxu0 0.0
        %859 = vmatprep.subr.mxu0 0.0
        %860 = vmatpush1.msra.mxu0 0.0
        %861 = vmatprep.subr.mxu0 0.0
        %862 = vmatpush1.msra.mxu0 0.0
        %863 = vmatprep.subr.mxu0 0.0
        %864 = vmatpush1.msra.mxu0 0.0
        %865 = vmatprep.subr.mxu0 0.0
        %866 = vmatpush1.msra.mxu0 0.0
        %867 = vmatprep.subr.mxu0 0.0
        %868 = vmatpush1.msra.mxu0 0.0
        %869 = vmatprep.subr.mxu0 0.0
        %870 = vmatpush1.msra.mxu0 0.0
        %871 = vmatprep.subr.mxu0 0.0
        %872 = vmatpush1.msra.mxu0 0.0
        %873 = vmatprep.subr.mxu0 0.0
        %874 = vmatpush1.msra.mxu0 0.0
        %875 = vmatprep.subr.mxu0 0.0
        %876 = vmatpush1.msra.mxu0 0.0
        %877 = vmatprep.subr.mxu0 0.0
        %878 = vmatpush1.msra.mxu0 0.0
        %879 = vmatprep.subr.mxu0 0.0
        %880 = vmatpush1.msra.mxu0 0.0
        %881 = vmatprep.subr.mxu0 0.0
        %882 = vmatpush1.msra.mxu0 0.0
        %883 = vmatprep.mubr.f32.mxu0 0.0
        %884 = vmatmul.mubr.f32.gmra.mrb[0].mxu0 %v811
        %v885 = vpop.f32.mrb[0].mxu0
        %v886 = vadd.f32 0.0, %v885
        %v887 = vpop.f32.mrb[0].mxu0
        %v888 = vadd.f32 0.0, %v887
        %889 = vdwg.mxu0
        %890 = vmatprep.subr.mxu0 0.0
        %891 = vmatpush1.msra.mxu0 %v817
        %892 = vmatprep.subr.mxu0 0.0
        %893 = vmatpush1.msra.mxu0 0.0
        %894 = vmatprep.subr.mxu0 0.0
        %895 = vmatpush1.msra.mxu0 0.0
        %896 = vmatprep.subr.mxu0 0.0
        %897 = vmatpush1.msra.mxu0 0.0
        %898 = vmatprep.subr.mxu0 0.0
        %899 = vmatpush1.msra.mxu0 0.0
        %900 = vmatprep.subr.mxu0 0.0
        %901 = vmatpush1.msra.mxu0 0.0
        %902 = vmatprep.subr.mxu0 0.0
        %903 = vmatpush1.msra.mxu0 0.0
        %904 = vmatprep.subr.mxu0 0.0
        %905 = vmatpush1.msra.mxu0 0.0
        %906 = vmatprep.subr.mxu0 0.0
        %907 = vmatpush1.msra.mxu0 0.0
        %908 = vmatprep.subr.mxu0 0.0
        %909 = vmatpush1.msra.mxu0 0.0
        %910 = vmatprep.subr.mxu0 0.0
        %911 = vmatpush1.msra.mxu0 0.0
        %912 = vmatprep.subr.mxu0 0.0
        %913 = vmatpush1.msra.mxu0 0.0
        %914 = vmatprep.subr.mxu0 0.0
        %915 = vmatpush1.msra.mxu0 0.0
        %916 = vmatprep.subr.mxu0 0.0
        %917 = vmatpush1.msra.mxu0 0.0
        %918 = vmatprep.subr.mxu0 0.0
        %919 = vmatpush1.msra.mxu0 0.0
        %920 = vmatprep.subr.mxu0 0.0
        %921 = vmatpush1.msra.mxu0 0.0
        %922 = vmatprep.subr.mxu0 0.0
        %923 = vmatpush1.msra.mxu0 0.0
        %924 = vmatprep.subr.mxu0 0.0
        %925 = vmatpush1.msra.mxu0 0.0
        %926 = vmatprep.subr.mxu0 0.0
        %927 = vmatpush1.msra.mxu0 0.0
        %928 = vmatprep.subr.mxu0 0.0
        %929 = vmatpush1.msra.mxu0 0.0
        %930 = vmatprep.subr.mxu0 0.0
        %931 = vmatpush1.msra.mxu0 0.0
        %932 = vmatprep.subr.mxu0 0.0
        %933 = vmatpush1.msra.mxu0 0.0
        %934 = vmatprep.subr.mxu0 0.0
        %935 = vmatpush1.msra.mxu0 0.0
        %936 = vmatprep.subr.mxu0 0.0
        %937 = vmatpush1.msra.mxu0 0.0
        %938 = vmatprep.subr.mxu0 0.0
        %939 = vmatpush1.msra.mxu0 0.0
        %940 = vmatprep.subr.mxu0 0.0
        %941 = vmatpush1.msra.mxu0 0.0
        %942 = vmatprep.subr.mxu0 0.0
        %943 = vmatpush1.msra.mxu0 0.0
        %944 = vmatprep.subr.mxu0 0.0
        %945 = vmatpush1.msra.mxu0 0.0
        %946 = vmatprep.subr.mxu0 0.0
        %947 = vmatpush1.msra.mxu0 0.0
        %948 = vmatprep.subr.mxu0 0.0
        %949 = vmatpush1.msra.mxu0 0.0
        %950 = vmatprep.subr.mxu0 0.0
        %951 = vmatpush1.msra.mxu0 0.0
        %952 = vmatprep.subr.mxu0 0.0
        %953 = vmatpush1.msra.mxu0 0.0
        %954 = vmatprep.mubr.f32.mxu0 0.0
        %955 = vmatmul.mubr.f32.gmra.mrb[0].mxu0 %v811
        %v956 = vpop.f32.mrb[0].mxu0
        %v957 = vadd.f32 0.0, %v956
        %v958 = vpop.f32.mrb[0].mxu0
        %959 = vdwg.mxu0
        %960 = vrot.lane.b32.xlu0 %v223, 127
        %v961 = vpop.permute.xlu0 %960
        %962 = vrot.lane.b32.xlu0 %v306, 127
        %v963 = vpop.permute.xlu0 %962
        %964 = vrot.lane.b32.xlu0 %v224, 127
        %v965 = vpop.permute.xlu0 %964
        %vm966 = vcmask 1039360
        %v967 = vsel %vm966, %v961, %v963
        %v968 = vsel %vm966, %v963, %v965
        %v970 = vsel %vm316, %v798, 0
        %v972 = vsel %vm320, %v967, 0
        %v974 = vsel %vm320, %v968, 0
        %v976 = vsel %vm320, %v965, 0
        %978 = vmatprep.subr.mxu0 %v974
        %979 = vmatpush1.msra.mxu0 %v972
        %980 = vmatprep.subr.mxu0 0.0
        %981 = vmatpush1.msra.mxu0 0.0
        %982 = vmatprep.subr.mxu0 0.0
        %983 = vmatpush1.msra.mxu0 0.0
        %984 = vmatprep.subr.mxu0 0.0
        %985 = vmatpush1.msra.mxu0 0.0
        %986 = vmatprep.subr.mxu0 0.0
        %987 = vmatpush1.msra.mxu0 0.0
        %988 = vmatprep.subr.mxu0 0.0
        %989 = vmatpush1.msra.mxu0 0.0
        %990 = vmatprep.subr.mxu0 0.0
        %991 = vmatpush1.msra.mxu0 0.0
        %992 = vmatprep.subr.mxu0 0.0
        %993 = vmatpush1.msra.mxu0 0.0
        %994 = vmatprep.subr.mxu0 0.0
        %995 = vmatpush1.msra.mxu0 0.0
        %996 = vmatprep.subr.mxu0 0.0
        %997 = vmatpush1.msra.mxu0 0.0
        %998 = vmatprep.subr.mxu0 0.0
        %999 = vmatpush1.msra.mxu0 0.0
        %1000 = vmatprep.subr.mxu0 0.0
        %1001 = vmatpush1.msra.mxu0 0.0
        %1002 = vmatprep.subr.mxu0 0.0
        %1003 = vmatpush1.msra.mxu0 0.0
        %1004 = vmatprep.subr.mxu0 0.0
        %1005 = vmatpush1.msra.mxu0 0.0
        %1006 = vmatprep.subr.mxu0 0.0
        %1007 = vmatpush1.msra.mxu0 0.0
        %1008 = vmatprep.subr.mxu0 0.0
        %1009 = vmatpush1.msra.mxu0 0.0
        %1010 = vmatprep.subr.mxu0 0.0
        %1011 = vmatpush1.msra.mxu0 0.0
        %1012 = vmatprep.subr.mxu0 0.0
        %1013 = vmatpush1.msra.mxu0 0.0
        %1014 = vmatprep.subr.mxu0 0.0
        %1015 = vmatpush1.msra.mxu0 0.0
        %1016 = vmatprep.subr.mxu0 0.0
        %1017 = vmatpush1.msra.mxu0 0.0
        %1018 = vmatprep.subr.mxu0 0.0
        %1019 = vmatpush1.msra.mxu0 0.0
        %1020 = vmatprep.subr.mxu0 0.0
        %1021 = vmatpush1.msra.mxu0 0.0
        %1022 = vmatprep.subr.mxu0 0.0
        %1023 = vmatpush1.msra.mxu0 0.0
        %1024 = vmatprep.subr.mxu0 0.0
        %1025 = vmatpush1.msra.mxu0 0.0
        %1026 = vmatprep.subr.mxu0 0.0
        %1027 = vmatpush1.msra.mxu0 0.0
        %1028 = vmatprep.subr.mxu0 0.0
        %1029 = vmatpush1.msra.mxu0 0.0
        %1030 = vmatprep.subr.mxu0 0.0
        %1031 = vmatpush1.msra.mxu0 0.0
        %1032 = vmatprep.subr.mxu0 0.0
        %1033 = vmatpush1.msra.mxu0 0.0
        %1034 = vmatprep.subr.mxu0 0.0
        %1035 = vmatpush1.msra.mxu0 0.0
        %1036 = vmatprep.subr.mxu0 0.0
        %1037 = vmatpush1.msra.mxu0 0.0
        %1038 = vmatprep.subr.mxu0 0.0
        %1039 = vmatpush1.msra.mxu0 0.0
        %1040 = vmatprep.subr.mxu0 0.0
        %1041 = vmatpush1.msra.mxu0 0.0
        %1042 = vmatprep.mubr.f32.mxu0 0.0
        %1043 = vmatmul.mubr.f32.gmra.mrb[0].mxu0 %v970
        %v1044 = vpop.f32.mrb[0].mxu0
        %v1045 = vadd.f32 %v886, %v1044
        %v1046 = vpop.f32.mrb[0].mxu0
        %v1047 = vadd.f32 %v888, %v1046
        %1048 = vdwg.mxu0
        %1049 = vmatprep.subr.mxu0 0.0
        %1050 = vmatpush1.msra.mxu0 %v976
        %1051 = vmatprep.subr.mxu0 0.0
        %1052 = vmatpush1.msra.mxu0 0.0
        %1053 = vmatprep.subr.mxu0 0.0
        %1054 = vmatpush1.msra.mxu0 0.0
        %1055 = vmatprep.subr.mxu0 0.0
        %1056 = vmatpush1.msra.mxu0 0.0
        %1057 = vmatprep.subr.mxu0 0.0
        %1058 = vmatpush1.msra.mxu0 0.0
        %1059 = vmatprep.subr.mxu0 0.0
        %1060 = vmatpush1.msra.mxu0 0.0
        %1061 = vmatprep.subr.mxu0 0.0
        %1062 = vmatpush1.msra.mxu0 0.0
        %1063 = vmatprep.subr.mxu0 0.0
        %1064 = vmatpush1.msra.mxu0 0.0
        %1065 = vmatprep.subr.mxu0 0.0
        %1066 = vmatpush1.msra.mxu0 0.0
        %1067 = vmatprep.subr.mxu0 0.0
        %1068 = vmatpush1.msra.mxu0 0.0
        %1069 = vmatprep.subr.mxu0 0.0
        %1070 = vmatpush1.msra.mxu0 0.0
        %1071 = vmatprep.subr.mxu0 0.0
        %1072 = vmatpush1.msra.mxu0 0.0
        %1073 = vmatprep.subr.mxu0 0.0
        %1074 = vmatpush1.msra.mxu0 0.0
        %1075 = vmatprep.subr.mxu0 0.0
        %1076 = vmatpush1.msra.mxu0 0.0
        %1077 = vmatprep.subr.mxu0 0.0
        %1078 = vmatpush1.msra.mxu0 0.0
        %1079 = vmatprep.subr.mxu0 0.0
        %1080 = vmatpush1.msra.mxu0 0.0
        %1081 = vmatprep.subr.mxu0 0.0
        %1082 = vmatpush1.msra.mxu0 0.0
        %1083 = vmatprep.subr.mxu0 0.0
        %1084 = vmatpush1.msra.mxu0 0.0
        %1085 = vmatprep.subr.mxu0 0.0
        %1086 = vmatpush1.msra.mxu0 0.0
        %1087 = vmatprep.subr.mxu0 0.0
        %1088 = vmatpush1.msra.mxu0 0.0
        %1089 = vmatprep.subr.mxu0 0.0
        %1090 = vmatpush1.msra.mxu0 0.0
        %1091 = vmatprep.subr.mxu0 0.0
        %1092 = vmatpush1.msra.mxu0 0.0
        %1093 = vmatprep.subr.mxu0 0.0
        %1094 = vmatpush1.msra.mxu0 0.0
        %1095 = vmatprep.subr.mxu0 0.0
        %1096 = vmatpush1.msra.mxu0 0.0
        %1097 = vmatprep.subr.mxu0 0.0
        %1098 = vmatpush1.msra.mxu0 0.0
        %1099 = vmatprep.subr.mxu0 0.0
        %1100 = vmatpush1.msra.mxu0 0.0
        %1101 = vmatprep.subr.mxu0 0.0
        %1102 = vmatpush1.msra.mxu0 0.0
        %1103 = vmatprep.subr.mxu0 0.0
        %1104 = vmatpush1.msra.mxu0 0.0
        %1105 = vmatprep.subr.mxu0 0.0
        %1106 = vmatpush1.msra.mxu0 0.0
        %1107 = vmatprep.subr.mxu0 0.0
        %1108 = vmatpush1.msra.mxu0 0.0
        %1109 = vmatprep.subr.mxu0 0.0
        %1110 = vmatpush1.msra.mxu0 0.0
        %1111 = vmatprep.subr.mxu0 0.0
        %1112 = vmatpush1.msra.mxu0 0.0
        %1113 = vmatprep.mubr.f32.mxu0 0.0
        %1114 = vmatmul.mubr.f32.gmra.mrb[0].mxu0 %v970
        %v1115 = vpop.f32.mrb[0].mxu0
        %v1116 = vadd.f32 %v957, %v1115
        %v1117 = vpop.f32.mrb[0].mxu0
        %1118 = vdwg.mxu0
        %s1119 = scalar_lea.vmem %s1, 28
        %v1120 = vld [vmem:[%s1119] sm:$0xf]
        %1121 = vrot.lane.b32.xlu0 %v223, 95
        %v1122 = vpop.permute.xlu0 %1121
        %1123 = vrot.lane.b32.xlu0 %v306, 95
        %v1124 = vpop.permute.xlu0 %1123
        %1125 = vrot.lane.b32.xlu0 %v224, 95
        %v1126 = vpop.permute.xlu0 %1125
        %vm1127 = vcmask 777216
        %v1128 = vsel %vm1127, %v1122, %v1124
        %v1129 = vsel %vm1127, %v1124, %v1126
        %v1131 = vsel %vm316, %v1120, 0
        %v1133 = vsel %vm320, %v1128, 0
        %v1135 = vsel %vm320, %v1129, 0
        %v1137 = vsel %vm320, %v1126, 0
        %1139 = vmatprep.subr.mxu0 %v1135
        %1140 = vmatpush1.msra.mxu0 %v1133
        %1141 = vmatprep.subr.mxu0 0.0
        %1142 = vmatpush1.msra.mxu0 0.0
        %1143 = vmatprep.subr.mxu0 0.0
        %1144 = vmatpush1.msra.mxu0 0.0
        %1145 = vmatprep.subr.mxu0 0.0
        %1146 = vmatpush1.msra.mxu0 0.0
        %1147 = vmatprep.subr.mxu0 0.0
        %1148 = vmatpush1.msra.mxu0 0.0
        %1149 = vmatprep.subr.mxu0 0.0
        %1150 = vmatpush1.msra.mxu0 0.0
        %1151 = vmatprep.subr.mxu0 0.0
        %1152 = vmatpush1.msra.mxu0 0.0
        %1153 = vmatprep.subr.mxu0 0.0
        %1154 = vmatpush1.msra.mxu0 0.0
        %1155 = vmatprep.subr.mxu0 0.0
        %1156 = vmatpush1.msra.mxu0 0.0
        %1157 = vmatprep.subr.mxu0 0.0
        %1158 = vmatpush1.msra.mxu0 0.0
        %1159 = vmatprep.subr.mxu0 0.0
        %1160 = vmatpush1.msra.mxu0 0.0
        %1161 = vmatprep.subr.mxu0 0.0
        %1162 = vmatpush1.msra.mxu0 0.0
        %1163 = vmatprep.subr.mxu0 0.0
        %1164 = vmatpush1.msra.mxu0 0.0
        %1165 = vmatprep.subr.mxu0 0.0
        %1166 = vmatpush1.msra.mxu0 0.0
        %1167 = vmatprep.subr.mxu0 0.0
        %1168 = vmatpush1.msra.mxu0 0.0
        %1169 = vmatprep.subr.mxu0 0.0
        %1170 = vmatpush1.msra.mxu0 0.0
        %1171 = vmatprep.subr.mxu0 0.0
        %1172 = vmatpush1.msra.mxu0 0.0
        %1173 = vmatprep.subr.mxu0 0.0
        %1174 = vmatpush1.msra.mxu0 0.0
        %1175 = vmatprep.subr.mxu0 0.0
        %1176 = vmatpush1.msra.mxu0 0.0
        %1177 = vmatprep.subr.mxu0 0.0
        %1178 = vmatpush1.msra.mxu0 0.0
        %1179 = vmatprep.subr.mxu0 0.0
        %1180 = vmatpush1.msra.mxu0 0.0
        %1181 = vmatprep.subr.mxu0 0.0
        %1182 = vmatpush1.msra.mxu0 0.0
        %1183 = vmatprep.subr.mxu0 0.0
        %1184 = vmatpush1.msra.mxu0 0.0
        %1185 = vmatprep.subr.mxu0 0.0
        %1186 = vmatpush1.msra.mxu0 0.0
        %1187 = vmatprep.subr.mxu0 0.0
        %1188 = vmatpush1.msra.mxu0 0.0
        %1189 = vmatprep.subr.mxu0 0.0
        %1190 = vmatpush1.msra.mxu0 0.0
        %1191 = vmatprep.subr.mxu0 0.0
        %1192 = vmatpush1.msra.mxu0 0.0
        %1193 = vmatprep.subr.mxu0 0.0
        %1194 = vmatpush1.msra.mxu0 0.0
        %1195 = vmatprep.subr.mxu0 0.0
        %1196 = vmatpush1.msra.mxu0 0.0
        %1197 = vmatprep.subr.mxu0 0.0
        %1198 = vmatpush1.msra.mxu0 0.0
        %1199 = vmatprep.subr.mxu0 0.0
        %1200 = vmatpush1.msra.mxu0 0.0
        %1201 = vmatprep.subr.mxu0 0.0
        %1202 = vmatpush1.msra.mxu0 0.0
        %1203 = vmatprep.mubr.f32.mxu0 0.0
        %1204 = vmatmul.mubr.f32.gmra.mrb[0].mxu0 %v1131
        %v1205 = vpop.f32.mrb[0].mxu0
        %v1206 = vadd.f32 0.0, %v1205
        %v1207 = vpop.f32.mrb[0].mxu0
        %v1208 = vadd.f32 0.0, %v1207
        %1209 = vdwg.mxu0
        %1210 = vmatprep.subr.mxu0 0.0
        %1211 = vmatpush1.msra.mxu0 %v1137
        %1212 = vmatprep.subr.mxu0 0.0
        %1213 = vmatpush1.msra.mxu0 0.0
        %1214 = vmatprep.subr.mxu0 0.0
        %1215 = vmatpush1.msra.mxu0 0.0
        %1216 = vmatprep.subr.mxu0 0.0
        %1217 = vmatpush1.msra.mxu0 0.0
        %1218 = vmatprep.subr.mxu0 0.0
        %1219 = vmatpush1.msra.mxu0 0.0
        %1220 = vmatprep.subr.mxu0 0.0
        %1221 = vmatpush1.msra.mxu0 0.0
        %1222 = vmatprep.subr.mxu0 0.0
        %1223 = vmatpush1.msra.mxu0 0.0
        %1224 = vmatprep.subr.mxu0 0.0
        %1225 = vmatpush1.msra.mxu0 0.0
        %1226 = vmatprep.subr.mxu0 0.0
        %1227 = vmatpush1.msra.mxu0 0.0
        %1228 = vmatprep.subr.mxu0 0.0
        %1229 = vmatpush1.msra.mxu0 0.0
        %1230 = vmatprep.subr.mxu0 0.0
        %1231 = vmatpush1.msra.mxu0 0.0
        %1232 = vmatprep.subr.mxu0 0.0
        %1233 = vmatpush1.msra.mxu0 0.0
        %1234 = vmatprep.subr.mxu0 0.0
        %1235 = vmatpush1.msra.mxu0 0.0
        %1236 = vmatprep.subr.mxu0 0.0
        %1237 = vmatpush1.msra.mxu0 0.0
        %1238 = vmatprep.subr.mxu0 0.0
        %1239 = vmatpush1.msra.mxu0 0.0
        %1240 = vmatprep.subr.mxu0 0.0
        %1241 = vmatpush1.msra.mxu0 0.0
        %1242 = vmatprep.subr.mxu0 0.0
        %1243 = vmatpush1.msra.mxu0 0.0
        %1244 = vmatprep.subr.mxu0 0.0
        %1245 = vmatpush1.msra.mxu0 0.0
        %1246 = vmatprep.subr.mxu0 0.0
        %1247 = vmatpush1.msra.mxu0 0.0
        %1248 = vmatprep.subr.mxu0 0.0
        %1249 = vmatpush1.msra.mxu0 0.0
        %1250 = vmatprep.subr.mxu0 0.0
        %1251 = vmatpush1.msra.mxu0 0.0
        %1252 = vmatprep.subr.mxu0 0.0
        %1253 = vmatpush1.msra.mxu0 0.0
        %1254 = vmatprep.subr.mxu0 0.0
        %1255 = vmatpush1.msra.mxu0 0.0
        %1256 = vmatprep.subr.mxu0 0.0
        %1257 = vmatpush1.msra.mxu0 0.0
        %1258 = vmatprep.subr.mxu0 0.0
        %1259 = vmatpush1.msra.mxu0 0.0
        %1260 = vmatprep.subr.mxu0 0.0
        %1261 = vmatpush1.msra.mxu0 0.0
        %1262 = vmatprep.subr.mxu0 0.0
        %1263 = vmatpush1.msra.mxu0 0.0
        %1264 = vmatprep.subr.mxu0 0.0
        %1265 = vmatpush1.msra.mxu0 0.0
        %1266 = vmatprep.subr.mxu0 0.0
        %1267 = vmatpush1.msra.mxu0 0.0
        %1268 = vmatprep.subr.mxu0 0.0
        %1269 = vmatpush1.msra.mxu0 0.0
        %1270 = vmatprep.subr.mxu0 0.0
        %1271 = vmatpush1.msra.mxu0 0.0
        %1272 = vmatprep.subr.mxu0 0.0
        %1273 = vmatpush1.msra.mxu0 0.0
        %1274 = vmatprep.mubr.f32.mxu0 0.0
        %1275 = vmatmul.mubr.f32.gmra.mrb[0].mxu0 %v1131
        %v1276 = vpop.f32.mrb[0].mxu0
        %v1277 = vadd.f32 0.0, %v1276
        %v1278 = vpop.f32.mrb[0].mxu0
        %1279 = vdwg.mxu0
        %v1280 = vadd.f32 %v1045, %v1206
        %v1281 = vadd.f32 %v1047, %v1208
        %v1282 = vadd.f32 %v1116, %v1277
        %v1283 = vadd.f32 %v794, %v1280
        %v1284 = vadd.f32 %v795, %v1281
        %v1285 = vadd.f32 %v796, %v1282
        %s1286 = scalar_lea.vmem %s1, 8
        %v1287 = vld [vmem:[%s1286] sm:$0xf]
        %s1288 = scalar_lea.vmem %s1, 20
        %v1289 = vld [vmem:[%s1288] sm:$0xf]
        %1290 = vrot.lane.b32.xlu0 %v223, 110
        %v1291 = vpop.permute.xlu0 %1290
        %1292 = vrot.lane.b32.xlu0 %v306, 110
        %v1293 = vpop.permute.xlu0 %1292
        %1294 = vrot.lane.b32.xlu0 %v224, 110
        %v1295 = vpop.permute.xlu0 %1294
        %vm1296 = vcmask 900096
        %v1297 = vsel %vm1296, %v1291, %v1293
        %v1298 = vsel %vm1296, %v1293, %v1295
        %v1300 = vsel %vm316, %v1289, 0
        %v1302 = vsel %vm320, %v1297, 0
        %v1304 = vsel %vm320, %v1298, 0
        %v1306 = vsel %vm320, %v1295, 0
        %1308 = vmatprep.subr.mxu0 %v1304
        %1309 = vmatpush1.msra.mxu0 %v1302
        %1310 = vmatprep.subr.mxu0 0.0
        %1311 = vmatpush1.msra.mxu0 0.0
        %1312 = vmatprep.subr.mxu0 0.0
        %1313 = vmatpush1.msra.mxu0 0.0
        %1314 = vmatprep.subr.mxu0 0.0
        %1315 = vmatpush1.msra.mxu0 0.0
        %1316 = vmatprep.subr.mxu0 0.0
        %1317 = vmatpush1.msra.mxu0 0.0
        %1318 = vmatprep.subr.mxu0 0.0
        %1319 = vmatpush1.msra.mxu0 0.0
        %1320 = vmatprep.subr.mxu0 0.0
        %1321 = vmatpush1.msra.mxu0 0.0
        %1322 = vmatprep.subr.mxu0 0.0
        %1323 = vmatpush1.msra.mxu0 0.0
        %1324 = vmatprep.subr.mxu0 0.0
        %1325 = vmatpush1.msra.mxu0 0.0
        %1326 = vmatprep.subr.mxu0 0.0
        %1327 = vmatpush1.msra.mxu0 0.0
        %1328 = vmatprep.subr.mxu0 0.0
        %1329 = vmatpush1.msra.mxu0 0.0
        %1330 = vmatprep.subr.mxu0 0.0
        %1331 = vmatpush1.msra.mxu0 0.0
        %1332 = vmatprep.subr.mxu0 0.0
        %1333 = vmatpush1.msra.mxu0 0.0
        %1334 = vmatprep.subr.mxu0 0.0
        %1335 = vmatpush1.msra.mxu0 0.0
        %1336 = vmatprep.subr.mxu0 0.0
        %1337 = vmatpush1.msra.mxu0 0.0
        %1338 = vmatprep.subr.mxu0 0.0
        %1339 = vmatpush1.msra.mxu0 0.0
        %1340 = vmatprep.subr.mxu0 0.0
        %1341 = vmatpush1.msra.mxu0 0.0
        %1342 = vmatprep.subr.mxu0 0.0
        %1343 = vmatpush1.msra.mxu0 0.0
        %1344 = vmatprep.subr.mxu0 0.0
        %1345 = vmatpush1.msra.mxu0 0.0
        %1346 = vmatprep.subr.mxu0 0.0
        %1347 = vmatpush1.msra.mxu0 0.0
        %1348 = vmatprep.subr.mxu0 0.0
        %1349 = vmatpush1.msra.mxu0 0.0
        %1350 = vmatprep.subr.mxu0 0.0
        %1351 = vmatpush1.msra.mxu0 0.0
        %1352 = vmatprep.subr.mxu0 0.0
        %1353 = vmatpush1.msra.mxu0 0.0
        %1354 = vmatprep.subr.mxu0 0.0
        %1355 = vmatpush1.msra.mxu0 0.0
        %1356 = vmatprep.subr.mxu0 0.0
        %1357 = vmatpush1.msra.mxu0 0.0
        %1358 = vmatprep.subr.mxu0 0.0
        %1359 = vmatpush1.msra.mxu0 0.0
        %1360 = vmatprep.subr.mxu0 0.0
        %1361 = vmatpush1.msra.mxu0 0.0
        %1362 = vmatprep.subr.mxu0 0.0
        %1363 = vmatpush1.msra.mxu0 0.0
        %1364 = vmatprep.subr.mxu0 0.0
        %1365 = vmatpush1.msra.mxu0 0.0
        %1366 = vmatprep.subr.mxu0 0.0
        %1367 = vmatpush1.msra.mxu0 0.0
        %1368 = vmatprep.subr.mxu0 0.0
        %1369 = vmatpush1.msra.mxu0 0.0
        %1370 = vmatprep.subr.mxu0 0.0
        %1371 = vmatpush1.msra.mxu0 0.0
        %1372 = vmatprep.mubr.f32.mxu0 0.0
        %1373 = vmatmul.mubr.f32.gmra.mrb[0].mxu0 %v1300
        %v1374 = vpop.f32.mrb[0].mxu0
        %v1375 = vadd.f32 0.0, %v1374
        %v1376 = vpop.f32.mrb[0].mxu0
        %v1377 = vadd.f32 0.0, %v1376
        %1378 = vdwg.mxu0
        %1379 = vmatprep.subr.mxu0 0.0
        %1380 = vmatpush1.msra.mxu0 %v1306
        %1381 = vmatprep.subr.mxu0 0.0
        %1382 = vmatpush1.msra.mxu0 0.0
        %1383 = vmatprep.subr.mxu0 0.0
        %1384 = vmatpush1.msra.mxu0 0.0
        %1385 = vmatprep.subr.mxu0 0.0
        %1386 = vmatpush1.msra.mxu0 0.0
        %1387 = vmatprep.subr.mxu0 0.0
        %1388 = vmatpush1.msra.mxu0 0.0
        %1389 = vmatprep.subr.mxu0 0.0
        %1390 = vmatpush1.msra.mxu0 0.0
        %1391 = vmatprep.subr.mxu0 0.0
        %1392 = vmatpush1.msra.mxu0 0.0
        %1393 = vmatprep.subr.mxu0 0.0
        %1394 = vmatpush1.msra.mxu0 0.0
        %1395 = vmatprep.subr.mxu0 0.0
        %1396 = vmatpush1.msra.mxu0 0.0
        %1397 = vmatprep.subr.mxu0 0.0
        %1398 = vmatpush1.msra.mxu0 0.0
        %1399 = vmatprep.subr.mxu0 0.0
        %1400 = vmatpush1.msra.mxu0 0.0
        %1401 = vmatprep.subr.mxu0 0.0
        %1402 = vmatpush1.msra.mxu0 0.0
        %1403 = vmatprep.subr.mxu0 0.0
        %1404 = vmatpush1.msra.mxu0 0.0
        %1405 = vmatprep.subr.mxu0 0.0
        %1406 = vmatpush1.msra.mxu0 0.0
        %1407 = vmatprep.subr.mxu0 0.0
        %1408 = vmatpush1.msra.mxu0 0.0
        %1409 = vmatprep.subr.mxu0 0.0
        %1410 = vmatpush1.msra.mxu0 0.0
        %1411 = vmatprep.subr.mxu0 0.0
        %1412 = vmatpush1.msra.mxu0 0.0
        %1413 = vmatprep.subr.mxu0 0.0
        %1414 = vmatpush1.msra.mxu0 0.0
        %1415 = vmatprep.subr.mxu0 0.0
        %1416 = vmatpush1.msra.mxu0 0.0
        %1417 = vmatprep.subr.mxu0 0.0
        %1418 = vmatpush1.msra.mxu0 0.0
        %1419 = vmatprep.subr.mxu0 0.0
        %1420 = vmatpush1.msra.mxu0 0.0
        %1421 = vmatprep.subr.mxu0 0.0
        %1422 = vmatpush1.msra.mxu0 0.0
        %1423 = vmatprep.subr.mxu0 0.0
        %1424 = vmatpush1.msra.mxu0 0.0
        %1425 = vmatprep.subr.mxu0 0.0
        %1426 = vmatpush1.msra.mxu0 0.0
        %1427 = vmatprep.subr.mxu0 0.0
        %1428 = vmatpush1.msra.mxu0 0.0
        %1429 = vmatprep.subr.mxu0 0.0
        %1430 = vmatpush1.msra.mxu0 0.0
        %1431 = vmatprep.subr.mxu0 0.0
        %1432 = vmatpush1.msra.mxu0 0.0
        %1433 = vmatprep.subr.mxu0 0.0
        %1434 = vmatpush1.msra.mxu0 0.0
        %1435 = vmatprep.subr.mxu0 0.0
        %1436 = vmatpush1.msra.mxu0 0.0
        %1437 = vmatprep.subr.mxu0 0.0
        %1438 = vmatpush1.msra.mxu0 0.0
        %1439 = vmatprep.subr.mxu0 0.0
        %1440 = vmatpush1.msra.mxu0 0.0
        %1441 = vmatprep.subr.mxu0 0.0
        %1442 = vmatpush1.msra.mxu0 0.0
        %1443 = vmatprep.mubr.f32.mxu0 0.0
        %1444 = vmatmul.mubr.f32.gmra.mrb[0].mxu0 %v1300
        %v1445 = vpop.f32.mrb[0].mxu0
        %v1446 = vadd.f32 0.0, %v1445
        %v1447 = vpop.f32.mrb[0].mxu0
        %1448 = vdwg.mxu0
        %1449 = vrot.lane.b32.xlu0 %v223, 126
        %v1450 = vpop.permute.xlu0 %1449
        %1451 = vrot.lane.b32.xlu0 %v306, 126
        %v1452 = vpop.permute.xlu0 %1451
        %1453 = vrot.lane.b32.xlu0 %v224, 126
        %v1454 = vpop.permute.xlu0 %1453
        %vm1455 = vcmask 1031168
        %v1456 = vsel %vm1455, %v1450, %v1452
        %v1457 = vsel %vm1455, %v1452, %v1454
        %v1459 = vsel %vm316, %v1287, 0
        %v1461 = vsel %vm320, %v1456, 0
        %v1463 = vsel %vm320, %v1457, 0
        %v1465 = vsel %vm320, %v1454, 0
        %1467 = vmatprep.subr.mxu0 %v1463
        %1468 = vmatpush1.msra.mxu0 %v1461
        %1469 = vmatprep.subr.mxu0 0.0
        %1470 = vmatpush1.msra.mxu0 0.0
        %1471 = vmatprep.subr.mxu0 0.0
        %1472 = vmatpush1.msra.mxu0 0.0
        %1473 = vmatprep.subr.mxu0 0.0
        %1474 = vmatpush1.msra.mxu0 0.0
        %1475 = vmatprep.subr.mxu0 0.0
        %1476 = vmatpush1.msra.mxu0 0.0
        %1477 = vmatprep.subr.mxu0 0.0
        %1478 = vmatpush1.msra.mxu0 0.0
        %1479 = vmatprep.subr.mxu0 0.0
        %1480 = vmatpush1.msra.mxu0 0.0
        %1481 = vmatprep.subr.mxu0 0.0
        %1482 = vmatpush1.msra.mxu0 0.0
        %1483 = vmatprep.subr.mxu0 0.0
        %1484 = vmatpush1.msra.mxu0 0.0
        %1485 = vmatprep.subr.mxu0 0.0
        %1486 = vmatpush1.msra.mxu0 0.0
        %1487 = vmatprep.subr.mxu0 0.0
        %1488 = vmatpush1.msra.mxu0 0.0
        %1489 = vmatprep.subr.mxu0 0.0
        %1490 = vmatpush1.msra.mxu0 0.0
        %1491 = vmatprep.subr.mxu0 0.0
        %1492 = vmatpush1.msra.mxu0 0.0
        %1493 = vmatprep.subr.mxu0 0.0
        %1494 = vmatpush1.msra.mxu0 0.0
        %1495 = vmatprep.subr.mxu0 0.0
        %1496 = vmatpush1.msra.mxu0 0.0
        %1497 = vmatprep.subr.mxu0 0.0
        %1498 = vmatpush1.msra.mxu0 0.0
        %1499 = vmatprep.subr.mxu0 0.0
        %1500 = vmatpush1.msra.mxu0 0.0
        %1501 = vmatprep.subr.mxu0 0.0
        %1502 = vmatpush1.msra.mxu0 0.0
        %1503 = vmatprep.subr.mxu0 0.0
        %1504 = vmatpush1.msra.mxu0 0.0
        %1505 = vmatprep.subr.mxu0 0.0
        %1506 = vmatpush1.msra.mxu0 0.0
        %1507 = vmatprep.subr.mxu0 0.0
        %1508 = vmatpush1.msra.mxu0 0.0
        %1509 = vmatprep.subr.mxu0 0.0
        %1510 = vmatpush1.msra.mxu0 0.0
        %1511 = vmatprep.subr.mxu0 0.0
        %1512 = vmatpush1.msra.mxu0 0.0
        %1513 = vmatprep.subr.mxu0 0.0
        %1514 = vmatpush1.msra.mxu0 0.0
        %1515 = vmatprep.subr.mxu0 0.0
        %1516 = vmatpush1.msra.mxu0 0.0
        %1517 = vmatprep.subr.mxu0 0.0
        %1518 = vmatpush1.msra.mxu0 0.0
        %1519 = vmatprep.subr.mxu0 0.0
        %1520 = vmatpush1.msra.mxu0 0.0
        %1521 = vmatprep.subr.mxu0 0.0
        %1522 = vmatpush1.msra.mxu0 0.0
        %1523 = vmatprep.subr.mxu0 0.0
        %1524 = vmatpush1.msra.mxu0 0.0
        %1525 = vmatprep.subr.mxu0 0.0
        %1526 = vmatpush1.msra.mxu0 0.0
        %1527 = vmatprep.subr.mxu0 0.0
        %1528 = vmatpush1.msra.mxu0 0.0
        %1529 = vmatprep.subr.mxu0 0.0
        %1530 = vmatpush1.msra.mxu0 0.0
        %1531 = vmatprep.mubr.f32.mxu0 0.0
        %1532 = vmatmul.mubr.f32.gmra.mrb[0].mxu0 %v1459
        %v1533 = vpop.f32.mrb[0].mxu0
        %v1534 = vadd.f32 %v1375, %v1533
        %v1535 = vpop.f32.mrb[0].mxu0
        %v1536 = vadd.f32 %v1377, %v1535
        %1537 = vdwg.mxu0
        %1538 = vmatprep.subr.mxu0 0.0
        %1539 = vmatpush1.msra.mxu0 %v1465
        %1540 = vmatprep.subr.mxu0 0.0
        %1541 = vmatpush1.msra.mxu0 0.0
        %1542 = vmatprep.subr.mxu0 0.0
        %1543 = vmatpush1.msra.mxu0 0.0
        %1544 = vmatprep.subr.mxu0 0.0
        %1545 = vmatpush1.msra.mxu0 0.0
        %1546 = vmatprep.subr.mxu0 0.0
        %1547 = vmatpush1.msra.mxu0 0.0
        %1548 = vmatprep.subr.mxu0 0.0
        %1549 = vmatpush1.msra.mxu0 0.0
        %1550 = vmatprep.subr.mxu0 0.0
        %1551 = vmatpush1.msra.mxu0 0.0
        %1552 = vmatprep.subr.mxu0 0.0
        %1553 = vmatpush1.msra.mxu0 0.0
        %1554 = vmatprep.subr.mxu0 0.0
        %1555 = vmatpush1.msra.mxu0 0.0
        %1556 = vmatprep.subr.mxu0 0.0
        %1557 = vmatpush1.msra.mxu0 0.0
        %1558 = vmatprep.subr.mxu0 0.0
        %1559 = vmatpush1.msra.mxu0 0.0
        %1560 = vmatprep.subr.mxu0 0.0
        %1561 = vmatpush1.msra.mxu0 0.0
        %1562 = vmatprep.subr.mxu0 0.0
        %1563 = vmatpush1.msra.mxu0 0.0
        %1564 = vmatprep.subr.mxu0 0.0
        %1565 = vmatpush1.msra.mxu0 0.0
        %1566 = vmatprep.subr.mxu0 0.0
        %1567 = vmatpush1.msra.mxu0 0.0
        %1568 = vmatprep.subr.mxu0 0.0
        %1569 = vmatpush1.msra.mxu0 0.0
        %1570 = vmatprep.subr.mxu0 0.0
        %1571 = vmatpush1.msra.mxu0 0.0
        %1572 = vmatprep.subr.mxu0 0.0
        %1573 = vmatpush1.msra.mxu0 0.0
        %1574 = vmatprep.subr.mxu0 0.0
        %1575 = vmatpush1.msra.mxu0 0.0
        %1576 = vmatprep.subr.mxu0 0.0
        %1577 = vmatpush1.msra.mxu0 0.0
        %1578 = vmatprep.subr.mxu0 0.0
        %1579 = vmatpush1.msra.mxu0 0.0
        %1580 = vmatprep.subr.mxu0 0.0
        %1581 = vmatpush1.msra.mxu0 0.0
        %1582 = vmatprep.subr.mxu0 0.0
        %1583 = vmatpush1.msra.mxu0 0.0
        %1584 = vmatprep.subr.mxu0 0.0
        %1585 = vmatpush1.msra.mxu0 0.0
        %1586 = vmatprep.subr.mxu0 0.0
        %1587 = vmatpush1.msra.mxu0 0.0
        %1588 = vmatprep.subr.mxu0 0.0
        %1589 = vmatpush1.msra.mxu0 0.0
        %1590 = vmatprep.subr.mxu0 0.0
        %1591 = vmatpush1.msra.mxu0 0.0
        %1592 = vmatprep.subr.mxu0 0.0
        %1593 = vmatpush1.msra.mxu0 0.0
        %1594 = vmatprep.subr.mxu0 0.0
        %1595 = vmatpush1.msra.mxu0 0.0
        %1596 = vmatprep.subr.mxu0 0.0
        %1597 = vmatpush1.msra.mxu0 0.0
        %1598 = vmatprep.subr.mxu0 0.0
        %1599 = vmatpush1.msra.mxu0 0.0
        %1600 = vmatprep.subr.mxu0 0.0
        %1601 = vmatpush1.msra.mxu0 0.0
        %1602 = vmatprep.mubr.f32.mxu0 0.0
        %1603 = vmatmul.mubr.f32.gmra.mrb[0].mxu0 %v1459
        %v1604 = vpop.f32.mrb[0].mxu0
        %v1605 = vadd.f32 %v1446, %v1604
        %v1606 = vpop.f32.mrb[0].mxu0
        %1607 = vdwg.mxu0
        %s1608 = scalar_lea.vmem %s1, 32
        %v1609 = vld [vmem:[%s1608] sm:$0xf]
        %1610 = vrot.lane.b32.xlu0 %v223, 94
        %v1611 = vpop.permute.xlu0 %1610
        %1612 = vrot.lane.b32.xlu0 %v306, 94
        %v1613 = vpop.permute.xlu0 %1612
        %1614 = vrot.lane.b32.xlu0 %v224, 94
        %v1615 = vpop.permute.xlu0 %1614
        %vm1616 = vcmask 769024
        %v1617 = vsel %vm1616, %v1611, %v1613
        %v1618 = vsel %vm1616, %v1613, %v1615
        %v1620 = vsel %vm316, %v1609, 0
        %v1622 = vsel %vm320, %v1617, 0
        %v1624 = vsel %vm320, %v1618, 0
        %v1626 = vsel %vm320, %v1615, 0
        %1628 = vmatprep.subr.mxu0 %v1624
        %1629 = vmatpush1.msra.mxu0 %v1622
        %1630 = vmatprep.subr.mxu0 0.0
        %1631 = vmatpush1.msra.mxu0 0.0
        %1632 = vmatprep.subr.mxu0 0.0
        %1633 = vmatpush1.msra.mxu0 0.0
        %1634 = vmatprep.subr.mxu0 0.0
        %1635 = vmatpush1.msra.mxu0 0.0
        %1636 = vmatprep.subr.mxu0 0.0
        %1637 = vmatpush1.msra.mxu0 0.0
        %1638 = vmatprep.subr.mxu0 0.0
        %1639 = vmatpush1.msra.mxu0 0.0
        %1640 = vmatprep.subr.mxu0 0.0
        %1641 = vmatpush1.msra.mxu0 0.0
        %1642 = vmatprep.subr.mxu0 0.0
        %1643 = vmatpush1.msra.mxu0 0.0
        %1644 = vmatprep.subr.mxu0 0.0
        %1645 = vmatpush1.msra.mxu0 0.0
        %1646 = vmatprep.subr.mxu0 0.0
        %1647 = vmatpush1.msra.mxu0 0.0
        %1648 = vmatprep.subr.mxu0 0.0
        %1649 = vmatpush1.msra.mxu0 0.0
        %1650 = vmatprep.subr.mxu0 0.0
        %1651 = vmatpush1.msra.mxu0 0.0
        %1652 = vmatprep.subr.mxu0 0.0
        %1653 = vmatpush1.msra.mxu0 0.0
        %1654 = vmatprep.subr.mxu0 0.0
        %1655 = vmatpush1.msra.mxu0 0.0
        %1656 = vmatprep.subr.mxu0 0.0
        %1657 = vmatpush1.msra.mxu0 0.0
        %1658 = vmatprep.subr.mxu0 0.0
        %1659 = vmatpush1.msra.mxu0 0.0
        %1660 = vmatprep.subr.mxu0 0.0
        %1661 = vmatpush1.msra.mxu0 0.0
        %1662 = vmatprep.subr.mxu0 0.0
        %1663 = vmatpush1.msra.mxu0 0.0
        %1664 = vmatprep.subr.mxu0 0.0
        %1665 = vmatpush1.msra.mxu0 0.0
        %1666 = vmatprep.subr.mxu0 0.0
        %1667 = vmatpush1.msra.mxu0 0.0
        %1668 = vmatprep.subr.mxu0 0.0
        %1669 = vmatpush1.msra.mxu0 0.0
        %1670 = vmatprep.subr.mxu0 0.0
        %1671 = vmatpush1.msra.mxu0 0.0
        %1672 = vmatprep.subr.mxu0 0.0
        %1673 = vmatpush1.msra.mxu0 0.0
        %1674 = vmatprep.subr.mxu0 0.0
        %1675 = vmatpush1.msra.mxu0 0.0
        %1676 = vmatprep.subr.mxu0 0.0
        %1677 = vmatpush1.msra.mxu0 0.0
        %1678 = vmatprep.subr.mxu0 0.0
        %1679 = vmatpush1.msra.mxu0 0.0
        %1680 = vmatprep.subr.mxu0 0.0
        %1681 = vmatpush1.msra.mxu0 0.0
        %1682 = vmatprep.subr.mxu0 0.0
        %1683 = vmatpush1.msra.mxu0 0.0
        %1684 = vmatprep.subr.mxu0 0.0
        %1685 = vmatpush1.msra.mxu0 0.0
        %1686 = vmatprep.subr.mxu0 0.0
        %1687 = vmatpush1.msra.mxu0 0.0
        %1688 = vmatprep.subr.mxu0 0.0
        %1689 = vmatpush1.msra.mxu0 0.0
        %1690 = vmatprep.subr.mxu0 0.0
        %1691 = vmatpush1.msra.mxu0 0.0
        %1692 = vmatprep.mubr.f32.mxu0 0.0
        %1693 = vmatmul.mubr.f32.gmra.mrb[0].mxu0 %v1620
        %v1694 = vpop.f32.mrb[0].mxu0
        %v1695 = vadd.f32 0.0, %v1694
        %v1696 = vpop.f32.mrb[0].mxu0
        %v1697 = vadd.f32 0.0, %v1696
        %1698 = vdwg.mxu0
        %1699 = vmatprep.subr.mxu0 0.0
        %1700 = vmatpush1.msra.mxu0 %v1626
        %1701 = vmatprep.subr.mxu0 0.0
        %1702 = vmatpush1.msra.mxu0 0.0
        %1703 = vmatprep.subr.mxu0 0.0
        %1704 = vmatpush1.msra.mxu0 0.0
        %1705 = vmatprep.subr.mxu0 0.0
        %1706 = vmatpush1.msra.mxu0 0.0
        %1707 = vmatprep.subr.mxu0 0.0
        %1708 = vmatpush1.msra.mxu0 0.0
        %1709 = vmatprep.subr.mxu0 0.0
        %1710 = vmatpush1.msra.mxu0 0.0
        %1711 = vmatprep.subr.mxu0 0.0
        %1712 = vmatpush1.msra.mxu0 0.0
        %1713 = vmatprep.subr.mxu0 0.0
        %1714 = vmatpush1.msra.mxu0 0.0
        %1715 = vmatprep.subr.mxu0 0.0
        %1716 = vmatpush1.msra.mxu0 0.0
        %1717 = vmatprep.subr.mxu0 0.0
        %1718 = vmatpush1.msra.mxu0 0.0
        %1719 = vmatprep.subr.mxu0 0.0
        %1720 = vmatpush1.msra.mxu0 0.0
        %1721 = vmatprep.subr.mxu0 0.0
        %1722 = vmatpush1.msra.mxu0 0.0
        %1723 = vmatprep.subr.mxu0 0.0
        %1724 = vmatpush1.msra.mxu0 0.0
        %1725 = vmatprep.subr.mxu0 0.0
        %1726 = vmatpush1.msra.mxu0 0.0
        %1727 = vmatprep.subr.mxu0 0.0
        %1728 = vmatpush1.msra.mxu0 0.0
        %1729 = vmatprep.subr.mxu0 0.0
        %1730 = vmatpush1.msra.mxu0 0.0
        %1731 = vmatprep.subr.mxu0 0.0
        %1732 = vmatpush1.msra.mxu0 0.0
        %1733 = vmatprep.subr.mxu0 0.0
        %1734 = vmatpush1.msra.mxu0 0.0
        %1735 = vmatprep.subr.mxu0 0.0
        %1736 = vmatpush1.msra.mxu0 0.0
        %1737 = vmatprep.subr.mxu0 0.0
        %1738 = vmatpush1.msra.mxu0 0.0
        %1739 = vmatprep.subr.mxu0 0.0
        %1740 = vmatpush1.msra.mxu0 0.0
        %1741 = vmatprep.subr.mxu0 0.0
        %1742 = vmatpush1.msra.mxu0 0.0
        %1743 = vmatprep.subr.mxu0 0.0
        %1744 = vmatpush1.msra.mxu0 0.0
        %1745 = vmatprep.subr.mxu0 0.0
        %1746 = vmatpush1.msra.mxu0 0.0
        %1747 = vmatprep.subr.mxu0 0.0
        %1748 = vmatpush1.msra.mxu0 0.0
        %1749 = vmatprep.subr.mxu0 0.0
        %1750 = vmatpush1.msra.mxu0 0.0
        %1751 = vmatprep.subr.mxu0 0.0
        %1752 = vmatpush1.msra.mxu0 0.0
        %1753 = vmatprep.subr.mxu0 0.0
        %1754 = vmatpush1.msra.mxu0 0.0
        %1755 = vmatprep.subr.mxu0 0.0
        %1756 = vmatpush1.msra.mxu0 0.0
        %1757 = vmatprep.subr.mxu0 0.0
        %1758 = vmatpush1.msra.mxu0 0.0
        %1759 = vmatprep.subr.mxu0 0.0
        %1760 = vmatpush1.msra.mxu0 0.0
        %1761 = vmatprep.subr.mxu0 0.0
        %1762 = vmatpush1.msra.mxu0 0.0
        %1763 = vmatprep.mubr.f32.mxu0 0.0
        %1764 = vmatmul.mubr.f32.gmra.mrb[0].mxu0 %v1620
        %v1765 = vpop.f32.mrb[0].mxu0
        %v1766 = vadd.f32 0.0, %v1765
        %v1767 = vpop.f32.mrb[0].mxu0
        %1768 = vdwg.mxu0
        %v1769 = vadd.f32 %v1534, %v1695
        %v1770 = vadd.f32 %v1536, %v1697
        %v1771 = vadd.f32 %v1605, %v1766
        %vm1772 = vcmp.le.s32.totalorder %v265, 14
        %vm1773 = vcmp.le.s32.totalorder %v266, 14
        %vm1774 = vcmp.le.s32.totalorder %v267, 14
        %v1775 = vsel %vm1772, 1, 0
        %v1776 = vsel %vm1773, 1, 0
        %v1777 = vsel %vm1774, 1, 0
        %vm1778 = vcmp.eq.s32.totalorder %v1775, 1
        %vm1779 = vcmp.eq.s32.totalorder %v1776, 1
        %vm1780 = vcmp.eq.s32.totalorder %v1777, 1
        %v1781 = vsel %vm1778, %v1769, 0.0
        %v1782 = vsel %vm1779, %v1770, 0.0
        %v1783 = vsel %vm1780, %v1771, 0.0
        %v1784 = vadd.f32 %v1283, %v1781
        %v1785 = vadd.f32 %v1284, %v1782
        %v1786 = vadd.f32 %v1285, %v1783
        %v1787 = vld [vmem:[%s2] sm:$0xf]
        %1789 = vset.pattern.permute.xlu0 0
        %1790 = vperm.xlu0 %1789, %v1787
        %v1791 = vpop.permute.xlu0 %1790
        %v1793 = vadd.f32 %v1784, %v1791
        %v1794 = vadd.f32 %v1785, %v1791
        %v1795 = vadd.f32 %v1786, %v1791
        %v1796 = vmax.f32 %v1793, 0.0
        %v1797 = vmax.f32 %v1794, 0.0
        %v1798 = vmax.f32 %v1795, 0.0
        %v1799 = vsel %vm274, 1, 0
        %v1800 = vsel %vm275, 1, 0
        %v1801 = vsel %vm276, 1, 0
        %vm1802 = vcmp.eq.s32.totalorder %v1799, 1
        %vm1803 = vcmp.eq.s32.totalorder %v1800, 1
        %vm1804 = vcmp.eq.s32.totalorder %v1801, 1
        %v1805 = vsel %vm1802, %v1796, 0.0
        %v1806 = vsel %vm1803, %v1797, 0.0
        %v1807 = vsel %vm1804, %v1798, 0.0
        %v1808 = vld [vmem:[%s3] sm:$0xf]
        %s1809 = scalar_lea.vmem %s3, 12
        %v1810 = vld [vmem:[%s1809] sm:$0xf]
        %1814 = vrot.lane.b32.xlu0 %v1805, 112
        %v1815 = vpop.permute.xlu0 %1814
        %1816 = vrot.lane.b32.xlu0 %v1806, 112
        %v1817 = vpop.permute.xlu0 %1816
        %1818 = vrot.lane.b32.xlu0 %v1807, 112
        %v1819 = vpop.permute.xlu0 %1818
        %v1820 = vsel %vm313, %v1815, %v1817
        %v1821 = vsel %vm313, %v1817, %v1819
        %v1823 = vsel %vm316, %v1810, 0
        %v1825 = vsel %vm320, %v1820, 0
        %v1827 = vsel %vm320, %v1821, 0
        %1829 = vmatprep.subr.mxu0 %v1827
        %1830 = vmatpush1.msra.mxu0 %v1825
        %1831 = vmatprep.subr.mxu0 0.0
        %1832 = vmatpush1.msra.mxu0 0.0
        %1833 = vmatprep.subr.mxu0 0.0
        %1834 = vmatpush1.msra.mxu0 0.0
        %1835 = vmatprep.subr.mxu0 0.0
        %1836 = vmatpush1.msra.mxu0 0.0
        %1837 = vmatprep.subr.mxu0 0.0
        %1838 = vmatpush1.msra.mxu0 0.0
        %1839 = vmatprep.subr.mxu0 0.0
        %1840 = vmatpush1.msra.mxu0 0.0
        %1841 = vmatprep.subr.mxu0 0.0
        %1842 = vmatpush1.msra.mxu0 0.0
        %1843 = vmatprep.subr.mxu0 0.0
        %1844 = vmatpush1.msra.mxu0 0.0
        %1845 = vmatprep.subr.mxu0 0.0
        %1846 = vmatpush1.msra.mxu0 0.0
        %1847 = vmatprep.subr.mxu0 0.0
        %1848 = vmatpush1.msra.mxu0 0.0
        %1849 = vmatprep.subr.mxu0 0.0
        %1850 = vmatpush1.msra.mxu0 0.0
        %1851 = vmatprep.subr.mxu0 0.0
        %1852 = vmatpush1.msra.mxu0 0.0
        %1853 = vmatprep.subr.mxu0 0.0
        %1854 = vmatpush1.msra.mxu0 0.0
        %1855 = vmatprep.subr.mxu0 0.0
        %1856 = vmatpush1.msra.mxu0 0.0
        %1857 = vmatprep.subr.mxu0 0.0
        %1858 = vmatpush1.msra.mxu0 0.0
        %1859 = vmatprep.subr.mxu0 0.0
        %1860 = vmatpush1.msra.mxu0 0.0
        %1861 = vmatprep.subr.mxu0 0.0
        %1862 = vmatpush1.msra.mxu0 0.0
        %1863 = vmatprep.subr.mxu0 0.0
        %1864 = vmatpush1.msra.mxu0 0.0
        %1865 = vmatprep.subr.mxu0 0.0
        %1866 = vmatpush1.msra.mxu0 0.0
        %1867 = vmatprep.subr.mxu0 0.0
        %1868 = vmatpush1.msra.mxu0 0.0
        %1869 = vmatprep.subr.mxu0 0.0
        %1870 = vmatpush1.msra.mxu0 0.0
        %1871 = vmatprep.subr.mxu0 0.0
        %1872 = vmatpush1.msra.mxu0 0.0
        %1873 = vmatprep.subr.mxu0 0.0
        %1874 = vmatpush1.msra.mxu0 0.0
        %1875 = vmatprep.subr.mxu0 0.0
        %1876 = vmatpush1.msra.mxu0 0.0
        %1877 = vmatprep.subr.mxu0 0.0
        %1878 = vmatpush1.msra.mxu0 0.0
        %1879 = vmatprep.subr.mxu0 0.0
        %1880 = vmatpush1.msra.mxu0 0.0
        %1881 = vmatprep.subr.mxu0 0.0
        %1882 = vmatpush1.msra.mxu0 0.0
        %1883 = vmatprep.subr.mxu0 0.0
        %1884 = vmatpush1.msra.mxu0 0.0
        %1885 = vmatprep.subr.mxu0 0.0
        %1886 = vmatpush1.msra.mxu0 0.0
        %1887 = vmatprep.subr.mxu0 0.0
        %1888 = vmatpush1.msra.mxu0 0.0
        %1889 = vmatprep.subr.mxu0 0.0
        %1890 = vmatpush1.msra.mxu0 0.0
        %1891 = vmatprep.subr.mxu0 0.0
        %1892 = vmatpush1.msra.mxu0 0.0
        %1893 = vmatprep.mubr.f32.mxu0 0.0
        %1894 = vmatmul.mubr.f32.gmra.mrb[0].mxu0 %v1823
        %v1895 = vpop.f32.mrb[0].mxu0
        %v1896 = vadd.f32 0.0, %v1895
        %v1897 = vpop.f32.mrb[0].mxu0
        %v1898 = vadd.f32 0.0, %v1897
        %1899 = vdwg.mxu0
        %v1901 = vsel %vm316, %v1808, 0
        %v1903 = vsel %vm320, %v1805, 0
        %v1905 = vsel %vm320, %v1806, 0
        %1907 = vmatprep.subr.mxu0 %v1905
        %1908 = vmatpush1.msra.mxu0 %v1903
        %1909 = vmatprep.subr.mxu0 0.0
        %1910 = vmatpush1.msra.mxu0 0.0
        %1911 = vmatprep.subr.mxu0 0.0
        %1912 = vmatpush1.msra.mxu0 0.0
        %1913 = vmatprep.subr.mxu0 0.0
        %1914 = vmatpush1.msra.mxu0 0.0
        %1915 = vmatprep.subr.mxu0 0.0
        %1916 = vmatpush1.msra.mxu0 0.0
        %1917 = vmatprep.subr.mxu0 0.0
        %1918 = vmatpush1.msra.mxu0 0.0
        %1919 = vmatprep.subr.mxu0 0.0
        %1920 = vmatpush1.msra.mxu0 0.0
        %1921 = vmatprep.subr.mxu0 0.0
        %1922 = vmatpush1.msra.mxu0 0.0
        %1923 = vmatprep.subr.mxu0 0.0
        %1924 = vmatpush1.msra.mxu0 0.0
        %1925 = vmatprep.subr.mxu0 0.0
        %1926 = vmatpush1.msra.mxu0 0.0
        %1927 = vmatprep.subr.mxu0 0.0
        %1928 = vmatpush1.msra.mxu0 0.0
        %1929 = vmatprep.subr.mxu0 0.0
        %1930 = vmatpush1.msra.mxu0 0.0
        %1931 = vmatprep.subr.mxu0 0.0
        %1932 = vmatpush1.msra.mxu0 0.0
        %1933 = vmatprep.subr.mxu0 0.0
        %1934 = vmatpush1.msra.mxu0 0.0
        %1935 = vmatprep.subr.mxu0 0.0
        %1936 = vmatpush1.msra.mxu0 0.0
        %1937 = vmatprep.subr.mxu0 0.0
        %1938 = vmatpush1.msra.mxu0 0.0
        %1939 = vmatprep.subr.mxu0 0.0
        %1940 = vmatpush1.msra.mxu0 0.0
        %1941 = vmatprep.subr.mxu0 0.0
        %1942 = vmatpush1.msra.mxu0 0.0
        %1943 = vmatprep.subr.mxu0 0.0
        %1944 = vmatpush1.msra.mxu0 0.0
        %1945 = vmatprep.subr.mxu0 0.0
        %1946 = vmatpush1.msra.mxu0 0.0
        %1947 = vmatprep.subr.mxu0 0.0
        %1948 = vmatpush1.msra.mxu0 0.0
        %1949 = vmatprep.subr.mxu0 0.0
        %1950 = vmatpush1.msra.mxu0 0.0
        %1951 = vmatprep.subr.mxu0 0.0
        %1952 = vmatpush1.msra.mxu0 0.0
        %1953 = vmatprep.subr.mxu0 0.0
        %1954 = vmatpush1.msra.mxu0 0.0
        %1955 = vmatprep.subr.mxu0 0.0
        %1956 = vmatpush1.msra.mxu0 0.0
        %1957 = vmatprep.subr.mxu0 0.0
        %1958 = vmatpush1.msra.mxu0 0.0
        %1959 = vmatprep.subr.mxu0 0.0
        %1960 = vmatpush1.msra.mxu0 0.0
        %1961 = vmatprep.subr.mxu0 0.0
        %1962 = vmatpush1.msra.mxu0 0.0
        %1963 = vmatprep.subr.mxu0 0.0
        %1964 = vmatpush1.msra.mxu0 0.0
        %1965 = vmatprep.subr.mxu0 0.0
        %1966 = vmatpush1.msra.mxu0 0.0
        %1967 = vmatprep.subr.mxu0 0.0
        %1968 = vmatpush1.msra.mxu0 0.0
        %1969 = vmatprep.subr.mxu0 0.0
        %1970 = vmatpush1.msra.mxu0 0.0
        %1971 = vmatprep.mubr.f32.mxu0 0.0
        %1972 = vmatmul.mubr.f32.gmra.mrb[0].mxu0 %v1901
        %v1973 = vpop.f32.mrb[0].mxu0
        %v1974 = vadd.f32 %v1896, %v1973
        %v1975 = vpop.f32.mrb[0].mxu0
        %v1976 = vadd.f32 %v1898, %v1975
        %1977 = vdwg.mxu0
        %s1978 = scalar_lea.vmem %s3, 24
        %v1979 = vld [vmem:[%s1978] sm:$0xf]
        %1980 = vrot.lane.b32.xlu0 %v1805, 96
        %v1981 = vpop.permute.xlu0 %1980
        %1982 = vrot.lane.b32.xlu0 %v1806, 96
        %v1983 = vpop.permute.xlu0 %1982
        %1984 = vrot.lane.b32.xlu0 %v1807, 96
        %v1985 = vpop.permute.xlu0 %1984
        %v1986 = vsel %vm626, %v1981, %v1983
        %v1987 = vsel %vm626, %v1983, %v1985
        %v1989 = vsel %vm316, %v1979, 0
        %v1991 = vsel %vm320, %v1986, 0
        %v1993 = vsel %vm320, %v1987, 0
        %1995 = vmatprep.subr.mxu0 %v1993
        %1996 = vmatpush1.msra.mxu0 %v1991
        %1997 = vmatprep.subr.mxu0 0.0
        %1998 = vmatpush1.msra.mxu0 0.0
        %1999 = vmatprep.subr.mxu0 0.0
        %2000 = vmatpush1.msra.mxu0 0.0
        %2001 = vmatprep.subr.mxu0 0.0
        %2002 = vmatpush1.msra.mxu0 0.0
        %2003 = vmatprep.subr.mxu0 0.0
        %2004 = vmatpush1.msra.mxu0 0.0
        %2005 = vmatprep.subr.mxu0 0.0
        %2006 = vmatpush1.msra.mxu0 0.0
        %2007 = vmatprep.subr.mxu0 0.0
        %2008 = vmatpush1.msra.mxu0 0.0
        %2009 = vmatprep.subr.mxu0 0.0
        %2010 = vmatpush1.msra.mxu0 0.0
        %2011 = vmatprep.subr.mxu0 0.0
        %2012 = vmatpush1.msra.mxu0 0.0
        %2013 = vmatprep.subr.mxu0 0.0
        %2014 = vmatpush1.msra.mxu0 0.0
        %2015 = vmatprep.subr.mxu0 0.0
        %2016 = vmatpush1.msra.mxu0 0.0
        %2017 = vmatprep.subr.mxu0 0.0
        %2018 = vmatpush1.msra.mxu0 0.0
        %2019 = vmatprep.subr.mxu0 0.0
        %2020 = vmatpush1.msra.mxu0 0.0
        %2021 = vmatprep.subr.mxu0 0.0
        %2022 = vmatpush1.msra.mxu0 0.0
        %2023 = vmatprep.subr.mxu0 0.0
        %2024 = vmatpush1.msra.mxu0 0.0
        %2025 = vmatprep.subr.mxu0 0.0
        %2026 = vmatpush1.msra.mxu0 0.0
        %2027 = vmatprep.subr.mxu0 0.0
        %2028 = vmatpush1.msra.mxu0 0.0
        %2029 = vmatprep.subr.mxu0 0.0
        %2030 = vmatpush1.msra.mxu0 0.0
        %2031 = vmatprep.subr.mxu0 0.0
        %2032 = vmatpush1.msra.mxu0 0.0
        %2033 = vmatprep.subr.mxu0 0.0
        %2034 = vmatpush1.msra.mxu0 0.0
        %2035 = vmatprep.subr.mxu0 0.0
        %2036 = vmatpush1.msra.mxu0 0.0
        %2037 = vmatprep.subr.mxu0 0.0
        %2038 = vmatpush1.msra.mxu0 0.0
        %2039 = vmatprep.subr.mxu0 0.0
        %2040 = vmatpush1.msra.mxu0 0.0
        %2041 = vmatprep.subr.mxu0 0.0
        %2042 = vmatpush1.msra.mxu0 0.0
        %2043 = vmatprep.subr.mxu0 0.0
        %2044 = vmatpush1.msra.mxu0 0.0
        %2045 = vmatprep.subr.mxu0 0.0
        %2046 = vmatpush1.msra.mxu0 0.0
        %2047 = vmatprep.subr.mxu0 0.0
        %2048 = vmatpush1.msra.mxu0 0.0
        %2049 = vmatprep.subr.mxu0 0.0
        %2050 = vmatpush1.msra.mxu0 0.0
        %2051 = vmatprep.subr.mxu0 0.0
        %2052 = vmatpush1.msra.mxu0 0.0
        %2053 = vmatprep.subr.mxu0 0.0
        %2054 = vmatpush1.msra.mxu0 0.0
        %2055 = vmatprep.subr.mxu0 0.0
        %2056 = vmatpush1.msra.mxu0 0.0
        %2057 = vmatprep.subr.mxu0 0.0
        %2058 = vmatpush1.msra.mxu0 0.0
        %2059 = vmatprep.mubr.f32.mxu0 0.0
        %2060 = vmatmul.mubr.f32.gmra.mrb[0].mxu0 %v1989
        %v2061 = vpop.f32.mrb[0].mxu0
        %v2062 = vadd.f32 0.0, %v2061
        %v2063 = vpop.f32.mrb[0].mxu0
        %v2064 = vadd.f32 0.0, %v2063
        %2065 = vdwg.mxu0
        %v2066 = vadd.f32 %v1974, %v2062
        %v2067 = vadd.f32 %v1976, %v2064
        %vm2068 = vcmp.ge.s32.totalorder %v299, 1
        %vm2069 = vcmp.ge.s32.totalorder %v300, 1
        %v2070 = vsel %vm2068, 1, 0
        %v2071 = vsel %vm2069, 1, 0
        %vm2072 = vcmp.eq.s32.totalorder %v2070, 1
        %vm2073 = vcmp.eq.s32.totalorder %v2071, 1
        %v2074 = vsel %vm2072, %v2066, 0.0
        %v2075 = vsel %vm2073, %v2067, 0.0
        %v2076 = vadd.f32 %v2074, 0.0
        %v2077 = vadd.f32 %v2075, 0.0
        %s2078 = scalar_lea.vmem %s3, 4
        %v2079 = vld [vmem:[%s2078] sm:$0xf]
        %s2080 = scalar_lea.vmem %s3, 16
        %v2081 = vld [vmem:[%s2080] sm:$0xf]
        %2082 = vrot.lane.b32.xlu0 %v1805, 111
        %v2083 = vpop.permute.xlu0 %2082
        %2084 = vrot.lane.b32.xlu0 %v1806, 111
        %v2085 = vpop.permute.xlu0 %2084
        %2086 = vrot.lane.b32.xlu0 %v1807, 111
        %v2087 = vpop.permute.xlu0 %2086
        %v2088 = vsel %vm807, %v2083, %v2085
        %v2089 = vsel %vm807, %v2085, %v2087
        %v2091 = vsel %vm316, %v2081, 0
        %v2093 = vsel %vm320, %v2088, 0
        %v2095 = vsel %vm320, %v2089, 0
        %2097 = vmatprep.subr.mxu0 %v2095
        %2098 = vmatpush1.msra.mxu0 %v2093
        %2099 = vmatprep.subr.mxu0 0.0
        %2100 = vmatpush1.msra.mxu0 0.0
        %2101 = vmatprep.subr.mxu0 0.0
        %2102 = vmatpush1.msra.mxu0 0.0
        %2103 = vmatprep.subr.mxu0 0.0
        %2104 = vmatpush1.msra.mxu0 0.0
        %2105 = vmatprep.subr.mxu0 0.0
        %2106 = vmatpush1.msra.mxu0 0.0
        %2107 = vmatprep.subr.mxu0 0.0
        %2108 = vmatpush1.msra.mxu0 0.0
        %2109 = vmatprep.subr.mxu0 0.0
        %2110 = vmatpush1.msra.mxu0 0.0
        %2111 = vmatprep.subr.mxu0 0.0
        %2112 = vmatpush1.msra.mxu0 0.0
        %2113 = vmatprep.subr.mxu0 0.0
        %2114 = vmatpush1.msra.mxu0 0.0
        %2115 = vmatprep.subr.mxu0 0.0
        %2116 = vmatpush1.msra.mxu0 0.0
        %2117 = vmatprep.subr.mxu0 0.0
        %2118 = vmatpush1.msra.mxu0 0.0
        %2119 = vmatprep.subr.mxu0 0.0
        %2120 = vmatpush1.msra.mxu0 0.0
        %2121 = vmatprep.subr.mxu0 0.0
        %2122 = vmatpush1.msra.mxu0 0.0
        %2123 = vmatprep.subr.mxu0 0.0
        %2124 = vmatpush1.msra.mxu0 0.0
        %2125 = vmatprep.subr.mxu0 0.0
        %2126 = vmatpush1.msra.mxu0 0.0
        %2127 = vmatprep.subr.mxu0 0.0
        %2128 = vmatpush1.msra.mxu0 0.0
        %2129 = vmatprep.subr.mxu0 0.0
        %2130 = vmatpush1.msra.mxu0 0.0
        %2131 = vmatprep.subr.mxu0 0.0
        %2132 = vmatpush1.msra.mxu0 0.0
        %2133 = vmatprep.subr.mxu0 0.0
        %2134 = vmatpush1.msra.mxu0 0.0
        %2135 = vmatprep.subr.mxu0 0.0
        %2136 = vmatpush1.msra.mxu0 0.0
        %2137 = vmatprep.subr.mxu0 0.0
        %2138 = vmatpush1.msra.mxu0 0.0
        %2139 = vmatprep.subr.mxu0 0.0
        %2140 = vmatpush1.msra.mxu0 0.0
        %2141 = vmatprep.subr.mxu0 0.0
        %2142 = vmatpush1.msra.mxu0 0.0
        %2143 = vmatprep.subr.mxu0 0.0
        %2144 = vmatpush1.msra.mxu0 0.0
        %2145 = vmatprep.subr.mxu0 0.0
        %2146 = vmatpush1.msra.mxu0 0.0
        %2147 = vmatprep.subr.mxu0 0.0
        %2148 = vmatpush1.msra.mxu0 0.0
        %2149 = vmatprep.subr.mxu0 0.0
        %2150 = vmatpush1.msra.mxu0 0.0
        %2151 = vmatprep.subr.mxu0 0.0
        %2152 = vmatpush1.msra.mxu0 0.0
        %2153 = vmatprep.subr.mxu0 0.0
        %2154 = vmatpush1.msra.mxu0 0.0
        %2155 = vmatprep.subr.mxu0 0.0
        %2156 = vmatpush1.msra.mxu0 0.0
        %2157 = vmatprep.subr.mxu0 0.0
        %2158 = vmatpush1.msra.mxu0 0.0
        %2159 = vmatprep.subr.mxu0 0.0
        %2160 = vmatpush1.msra.mxu0 0.0
        %2161 = vmatprep.mubr.f32.mxu0 0.0
        %2162 = vmatmul.mubr.f32.gmra.mrb[0].mxu0 %v2091
        %v2163 = vpop.f32.mrb[0].mxu0
        %v2164 = vadd.f32 0.0, %v2163
        %v2165 = vpop.f32.mrb[0].mxu0
        %v2166 = vadd.f32 0.0, %v2165
        %2167 = vdwg.mxu0
        %2168 = vrot.lane.b32.xlu0 %v1805, 127
        %v2169 = vpop.permute.xlu0 %2168
        %2170 = vrot.lane.b32.xlu0 %v1806, 127
        %v2171 = vpop.permute.xlu0 %2170
        %2172 = vrot.lane.b32.xlu0 %v1807, 127
        %v2173 = vpop.permute.xlu0 %2172
        %v2174 = vsel %vm966, %v2169, %v2171
        %v2175 = vsel %vm966, %v2171, %v2173
        %v2177 = vsel %vm316, %v2079, 0
        %v2179 = vsel %vm320, %v2174, 0
        %v2181 = vsel %vm320, %v2175, 0
        %2183 = vmatprep.subr.mxu0 %v2181
        %2184 = vmatpush1.msra.mxu0 %v2179
        %2185 = vmatprep.subr.mxu0 0.0
        %2186 = vmatpush1.msra.mxu0 0.0
        %2187 = vmatprep.subr.mxu0 0.0
        %2188 = vmatpush1.msra.mxu0 0.0
        %2189 = vmatprep.subr.mxu0 0.0
        %2190 = vmatpush1.msra.mxu0 0.0
        %2191 = vmatprep.subr.mxu0 0.0
        %2192 = vmatpush1.msra.mxu0 0.0
        %2193 = vmatprep.subr.mxu0 0.0
        %2194 = vmatpush1.msra.mxu0 0.0
        %2195 = vmatprep.subr.mxu0 0.0
        %2196 = vmatpush1.msra.mxu0 0.0
        %2197 = vmatprep.subr.mxu0 0.0
        %2198 = vmatpush1.msra.mxu0 0.0
        %2199 = vmatprep.subr.mxu0 0.0
        %2200 = vmatpush1.msra.mxu0 0.0
        %2201 = vmatprep.subr.mxu0 0.0
        %2202 = vmatpush1.msra.mxu0 0.0
        %2203 = vmatprep.subr.mxu0 0.0
        %2204 = vmatpush1.msra.mxu0 0.0
        %2205 = vmatprep.subr.mxu0 0.0
        %2206 = vmatpush1.msra.mxu0 0.0
        %2207 = vmatprep.subr.mxu0 0.0
        %2208 = vmatpush1.msra.mxu0 0.0
        %2209 = vmatprep.subr.mxu0 0.0
        %2210 = vmatpush1.msra.mxu0 0.0
        %2211 = vmatprep.subr.mxu0 0.0
        %2212 = vmatpush1.msra.mxu0 0.0
        %2213 = vmatprep.subr.mxu0 0.0
        %2214 = vmatpush1.msra.mxu0 0.0
        %2215 = vmatprep.subr.mxu0 0.0
        %2216 = vmatpush1.msra.mxu0 0.0
        %2217 = vmatprep.subr.mxu0 0.0
        %2218 = vmatpush1.msra.mxu0 0.0
        %2219 = vmatprep.subr.mxu0 0.0
        %2220 = vmatpush1.msra.mxu0 0.0
        %2221 = vmatprep.subr.mxu0 0.0
        %2222 = vmatpush1.msra.mxu0 0.0
        %2223 = vmatprep.subr.mxu0 0.0
        %2224 = vmatpush1.msra.mxu0 0.0
        %2225 = vmatprep.subr.mxu0 0.0
        %2226 = vmatpush1.msra.mxu0 0.0
        %2227 = vmatprep.subr.mxu0 0.0
        %2228 = vmatpush1.msra.mxu0 0.0
        %2229 = vmatprep.subr.mxu0 0.0
        %2230 = vmatpush1.msra.mxu0 0.0
        %2231 = vmatprep.subr.mxu0 0.0
        %2232 = vmatpush1.msra.mxu0 0.0
        %2233 = vmatprep.subr.mxu0 0.0
        %2234 = vmatpush1.msra.mxu0 0.0
        %2235 = vmatprep.subr.mxu0 0.0
        %2236 = vmatpush1.msra.mxu0 0.0
        %2237 = vmatprep.subr.mxu0 0.0
        %2238 = vmatpush1.msra.mxu0 0.0
        %2239 = vmatprep.subr.mxu0 0.0
        %2240 = vmatpush1.msra.mxu0 0.0
        %2241 = vmatprep.subr.mxu0 0.0
        %2242 = vmatpush1.msra.mxu0 0.0
        %2243 = vmatprep.subr.mxu0 0.0
        %2244 = vmatpush1.msra.mxu0 0.0
        %2245 = vmatprep.subr.mxu0 0.0
        %2246 = vmatpush1.msra.mxu0 0.0
        %2247 = vmatprep.mubr.f32.mxu0 0.0
        %2248 = vmatmul.mubr.f32.gmra.mrb[0].mxu0 %v2177
        %v2249 = vpop.f32.mrb[0].mxu0
        %v2250 = vadd.f32 %v2164, %v2249
        %v2251 = vpop.f32.mrb[0].mxu0
        %v2252 = vadd.f32 %v2166, %v2251
        %2253 = vdwg.mxu0
        %s2254 = scalar_lea.vmem %s3, 28
        %v2255 = vld [vmem:[%s2254] sm:$0xf]
        %2256 = vrot.lane.b32.xlu0 %v1805, 95
        %v2257 = vpop.permute.xlu0 %2256
        %2258 = vrot.lane.b32.xlu0 %v1806, 95
        %v2259 = vpop.permute.xlu0 %2258
        %2260 = vrot.lane.b32.xlu0 %v1807, 95
        %v2261 = vpop.permute.xlu0 %2260
        %v2262 = vsel %vm1127, %v2257, %v2259
        %v2263 = vsel %vm1127, %v2259, %v2261
        %v2265 = vsel %vm316, %v2255, 0
        %v2267 = vsel %vm320, %v2262, 0
        %v2269 = vsel %vm320, %v2263, 0
        %2271 = vmatprep.subr.mxu0 %v2269
        %2272 = vmatpush1.msra.mxu0 %v2267
        %2273 = vmatprep.subr.mxu0 0.0
        %2274 = vmatpush1.msra.mxu0 0.0
        %2275 = vmatprep.subr.mxu0 0.0
        %2276 = vmatpush1.msra.mxu0 0.0
        %2277 = vmatprep.subr.mxu0 0.0
        %2278 = vmatpush1.msra.mxu0 0.0
        %2279 = vmatprep.subr.mxu0 0.0
        %2280 = vmatpush1.msra.mxu0 0.0
        %2281 = vmatprep.subr.mxu0 0.0
        %2282 = vmatpush1.msra.mxu0 0.0
        %2283 = vmatprep.subr.mxu0 0.0
        %2284 = vmatpush1.msra.mxu0 0.0
        %2285 = vmatprep.subr.mxu0 0.0
        %2286 = vmatpush1.msra.mxu0 0.0
        %2287 = vmatprep.subr.mxu0 0.0
        %2288 = vmatpush1.msra.mxu0 0.0
        %2289 = vmatprep.subr.mxu0 0.0
        %2290 = vmatpush1.msra.mxu0 0.0
        %2291 = vmatprep.subr.mxu0 0.0
        %2292 = vmatpush1.msra.mxu0 0.0
        %2293 = vmatprep.subr.mxu0 0.0
        %2294 = vmatpush1.msra.mxu0 0.0
        %2295 = vmatprep.subr.mxu0 0.0
        %2296 = vmatpush1.msra.mxu0 0.0
        %2297 = vmatprep.subr.mxu0 0.0
        %2298 = vmatpush1.msra.mxu0 0.0
        %2299 = vmatprep.subr.mxu0 0.0
        %2300 = vmatpush1.msra.mxu0 0.0
        %2301 = vmatprep.subr.mxu0 0.0
        %2302 = vmatpush1.msra.mxu0 0.0
        %2303 = vmatprep.subr.mxu0 0.0
        %2304 = vmatpush1.msra.mxu0 0.0
        %2305 = vmatprep.subr.mxu0 0.0
        %2306 = vmatpush1.msra.mxu0 0.0
        %2307 = vmatprep.subr.mxu0 0.0
        %2308 = vmatpush1.msra.mxu0 0.0
        %2309 = vmatprep.subr.mxu0 0.0
        %2310 = vmatpush1.msra.mxu0 0.0
        %2311 = vmatprep.subr.mxu0 0.0
        %2312 = vmatpush1.msra.mxu0 0.0
        %2313 = vmatprep.subr.mxu0 0.0
        %2314 = vmatpush1.msra.mxu0 0.0
        %2315 = vmatprep.subr.mxu0 0.0
        %2316 = vmatpush1.msra.mxu0 0.0
        %2317 = vmatprep.subr.mxu0 0.0
        %2318 = vmatpush1.msra.mxu0 0.0
        %2319 = vmatprep.subr.mxu0 0.0
        %2320 = vmatpush1.msra.mxu0 0.0
        %2321 = vmatprep.subr.mxu0 0.0
        %2322 = vmatpush1.msra.mxu0 0.0
        %2323 = vmatprep.subr.mxu0 0.0
        %2324 = vmatpush1.msra.mxu0 0.0
        %2325 = vmatprep.subr.mxu0 0.0
        %2326 = vmatpush1.msra.mxu0 0.0
        %2327 = vmatprep.subr.mxu0 0.0
        %2328 = vmatpush1.msra.mxu0 0.0
        %2329 = vmatprep.subr.mxu0 0.0
        %2330 = vmatpush1.msra.mxu0 0.0
        %2331 = vmatprep.subr.mxu0 0.0
        %2332 = vmatpush1.msra.mxu0 0.0
        %2333 = vmatprep.subr.mxu0 0.0
        %2334 = vmatpush1.msra.mxu0 0.0
        %2335 = vmatprep.mubr.f32.mxu0 0.0
        %2336 = vmatmul.mubr.f32.gmra.mrb[0].mxu0 %v2265
        %v2337 = vpop.f32.mrb[0].mxu0
        %v2338 = vadd.f32 0.0, %v2337
        %v2339 = vpop.f32.mrb[0].mxu0
        %v2340 = vadd.f32 0.0, %v2339
        %2341 = vdwg.mxu0
        %v2342 = vadd.f32 %v2250, %v2338
        %v2343 = vadd.f32 %v2252, %v2340
        %v2344 = vadd.f32 %v2076, %v2342
        %v2345 = vadd.f32 %v2077, %v2343
        %s2346 = scalar_lea.vmem %s3, 8
        %v2347 = vld [vmem:[%s2346] sm:$0xf]
        %s2348 = scalar_lea.vmem %s3, 20
        %v2349 = vld [vmem:[%s2348] sm:$0xf]
        %2350 = vrot.lane.b32.xlu0 %v1805, 110
        %v2351 = vpop.permute.xlu0 %2350
        %2352 = vrot.lane.b32.xlu0 %v1806, 110
        %v2353 = vpop.permute.xlu0 %2352
        %2354 = vrot.lane.b32.xlu0 %v1807, 110
        %v2355 = vpop.permute.xlu0 %2354
        %v2356 = vsel %vm1296, %v2351, %v2353
        %v2357 = vsel %vm1296, %v2353, %v2355
        %v2359 = vsel %vm316, %v2349, 0
        %v2361 = vsel %vm320, %v2356, 0
        %v2363 = vsel %vm320, %v2357, 0
        %2365 = vmatprep.subr.mxu0 %v2363
        %2366 = vmatpush1.msra.mxu0 %v2361
        %2367 = vmatprep.subr.mxu0 0.0
        %2368 = vmatpush1.msra.mxu0 0.0
        %2369 = vmatprep.subr.mxu0 0.0
        %2370 = vmatpush1.msra.mxu0 0.0
        %2371 = vmatprep.subr.mxu0 0.0
        %2372 = vmatpush1.msra.mxu0 0.0
        %2373 = vmatprep.subr.mxu0 0.0
        %2374 = vmatpush1.msra.mxu0 0.0
        %2375 = vmatprep.subr.mxu0 0.0
        %2376 = vmatpush1.msra.mxu0 0.0
        %2377 = vmatprep.subr.mxu0 0.0
        %2378 = vmatpush1.msra.mxu0 0.0
        %2379 = vmatprep.subr.mxu0 0.0
        %2380 = vmatpush1.msra.mxu0 0.0
        %2381 = vmatprep.subr.mxu0 0.0
        %2382 = vmatpush1.msra.mxu0 0.0
        %2383 = vmatprep.subr.mxu0 0.0
        %2384 = vmatpush1.msra.mxu0 0.0
        %2385 = vmatprep.subr.mxu0 0.0
        %2386 = vmatpush1.msra.mxu0 0.0
        %2387 = vmatprep.subr.mxu0 0.0
        %2388 = vmatpush1.msra.mxu0 0.0
        %2389 = vmatprep.subr.mxu0 0.0
        %2390 = vmatpush1.msra.mxu0 0.0
        %2391 = vmatprep.subr.mxu0 0.0
        %2392 = vmatpush1.msra.mxu0 0.0
        %2393 = vmatprep.subr.mxu0 0.0
        %2394 = vmatpush1.msra.mxu0 0.0
        %2395 = vmatprep.subr.mxu0 0.0
        %2396 = vmatpush1.msra.mxu0 0.0
        %2397 = vmatprep.subr.mxu0 0.0
        %2398 = vmatpush1.msra.mxu0 0.0
        %2399 = vmatprep.subr.mxu0 0.0
        %2400 = vmatpush1.msra.mxu0 0.0
        %2401 = vmatprep.subr.mxu0 0.0
        %2402 = vmatpush1.msra.mxu0 0.0
        %2403 = vmatprep.subr.mxu0 0.0
        %2404 = vmatpush1.msra.mxu0 0.0
        %2405 = vmatprep.subr.mxu0 0.0
        %2406 = vmatpush1.msra.mxu0 0.0
        %2407 = vmatprep.subr.mxu0 0.0
        %2408 = vmatpush1.msra.mxu0 0.0
        %2409 = vmatprep.subr.mxu0 0.0
        %2410 = vmatpush1.msra.mxu0 0.0
        %2411 = vmatprep.subr.mxu0 0.0
        %2412 = vmatpush1.msra.mxu0 0.0
        %2413 = vmatprep.subr.mxu0 0.0
        %2414 = vmatpush1.msra.mxu0 0.0
        %2415 = vmatprep.subr.mxu0 0.0
        %2416 = vmatpush1.msra.mxu0 0.0
        %2417 = vmatprep.subr.mxu0 0.0
        %2418 = vmatpush1.msra.mxu0 0.0
        %2419 = vmatprep.subr.mxu0 0.0
        %2420 = vmatpush1.msra.mxu0 0.0
        %2421 = vmatprep.subr.mxu0 0.0
        %2422 = vmatpush1.msra.mxu0 0.0
        %2423 = vmatprep.subr.mxu0 0.0
        %2424 = vmatpush1.msra.mxu0 0.0
        %2425 = vmatprep.subr.mxu0 0.0
        %2426 = vmatpush1.msra.mxu0 0.0
        %2427 = vmatprep.subr.mxu0 0.0
        %2428 = vmatpush1.msra.mxu0 0.0
        %2429 = vmatprep.mubr.f32.mxu0 0.0
        %2430 = vmatmul.mubr.f32.gmra.mrb[0].mxu0 %v2359
        %v2431 = vpop.f32.mrb[0].mxu0
        %v2432 = vadd.f32 0.0, %v2431
        %v2433 = vpop.f32.mrb[0].mxu0
        %v2434 = vadd.f32 0.0, %v2433
        %2435 = vdwg.mxu0
        %2436 = vrot.lane.b32.xlu0 %v1805, 126
        %v2437 = vpop.permute.xlu0 %2436
        %2438 = vrot.lane.b32.xlu0 %v1806, 126
        %v2439 = vpop.permute.xlu0 %2438
        %2440 = vrot.lane.b32.xlu0 %v1807, 126
        %v2441 = vpop.permute.xlu0 %2440
        %v2442 = vsel %vm1455, %v2437, %v2439
        %v2443 = vsel %vm1455, %v2439, %v2441
        %v2445 = vsel %vm316, %v2347, 0
        %v2447 = vsel %vm320, %v2442, 0
        %v2449 = vsel %vm320, %v2443, 0
        %2451 = vmatprep.subr.mxu0 %v2449
        %2452 = vmatpush1.msra.mxu0 %v2447
        %2453 = vmatprep.subr.mxu0 0.0
        %2454 = vmatpush1.msra.mxu0 0.0
        %2455 = vmatprep.subr.mxu0 0.0
        %2456 = vmatpush1.msra.mxu0 0.0
        %2457 = vmatprep.subr.mxu0 0.0
        %2458 = vmatpush1.msra.mxu0 0.0
        %2459 = vmatprep.subr.mxu0 0.0
        %2460 = vmatpush1.msra.mxu0 0.0
        %2461 = vmatprep.subr.mxu0 0.0
        %2462 = vmatpush1.msra.mxu0 0.0
        %2463 = vmatprep.subr.mxu0 0.0
        %2464 = vmatpush1.msra.mxu0 0.0
        %2465 = vmatprep.subr.mxu0 0.0
        %2466 = vmatpush1.msra.mxu0 0.0
        %2467 = vmatprep.subr.mxu0 0.0
        %2468 = vmatpush1.msra.mxu0 0.0
        %2469 = vmatprep.subr.mxu0 0.0
        %2470 = vmatpush1.msra.mxu0 0.0
        %2471 = vmatprep.subr.mxu0 0.0
        %2472 = vmatpush1.msra.mxu0 0.0
        %2473 = vmatprep.subr.mxu0 0.0
        %2474 = vmatpush1.msra.mxu0 0.0
        %2475 = vmatprep.subr.mxu0 0.0
        %2476 = vmatpush1.msra.mxu0 0.0
        %2477 = vmatprep.subr.mxu0 0.0
        %2478 = vmatpush1.msra.mxu0 0.0
        %2479 = vmatprep.subr.mxu0 0.0
        %2480 = vmatpush1.msra.mxu0 0.0
        %2481 = vmatprep.subr.mxu0 0.0
        %2482 = vmatpush1.msra.mxu0 0.0
        %2483 = vmatprep.subr.mxu0 0.0
        %2484 = vmatpush1.msra.mxu0 0.0
        %2485 = vmatprep.subr.mxu0 0.0
        %2486 = vmatpush1.msra.mxu0 0.0
        %2487 = vmatprep.subr.mxu0 0.0
        %2488 = vmatpush1.msra.mxu0 0.0
        %2489 = vmatprep.subr.mxu0 0.0
        %2490 = vmatpush1.msra.mxu0 0.0
        %2491 = vmatprep.subr.mxu0 0.0
        %2492 = vmatpush1.msra.mxu0 0.0
        %2493 = vmatprep.subr.mxu0 0.0
        %2494 = vmatpush1.msra.mxu0 0.0
        %2495 = vmatprep.subr.mxu0 0.0
        %2496 = vmatpush1.msra.mxu0 0.0
        %2497 = vmatprep.subr.mxu0 0.0
        %2498 = vmatpush1.msra.mxu0 0.0
        %2499 = vmatprep.subr.mxu0 0.0
        %2500 = vmatpush1.msra.mxu0 0.0
        %2501 = vmatprep.subr.mxu0 0.0
        %2502 = vmatpush1.msra.mxu0 0.0
        %2503 = vmatprep.subr.mxu0 0.0
        %2504 = vmatpush1.msra.mxu0 0.0
        %2505 = vmatprep.subr.mxu0 0.0
        %2506 = vmatpush1.msra.mxu0 0.0
        %2507 = vmatprep.subr.mxu0 0.0
        %2508 = vmatpush1.msra.mxu0 0.0
        %2509 = vmatprep.subr.mxu0 0.0
        %2510 = vmatpush1.msra.mxu0 0.0
        %2511 = vmatprep.subr.mxu0 0.0
        %2512 = vmatpush1.msra.mxu0 0.0
        %2513 = vmatprep.subr.mxu0 0.0
        %2514 = vmatpush1.msra.mxu0 0.0
        %2515 = vmatprep.mubr.f32.mxu0 0.0
        %2516 = vmatmul.mubr.f32.gmra.mrb[0].mxu0 %v2445
        %v2517 = vpop.f32.mrb[0].mxu0
        %v2518 = vadd.f32 %v2432, %v2517
        %v2519 = vpop.f32.mrb[0].mxu0
        %v2520 = vadd.f32 %v2434, %v2519
        %2521 = vdwg.mxu0
        %s2522 = scalar_lea.vmem %s3, 32
        %v2523 = vld [vmem:[%s2522] sm:$0xf]
        %2524 = vrot.lane.b32.xlu0 %v1805, 94
        %v2525 = vpop.permute.xlu0 %2524
        %2526 = vrot.lane.b32.xlu0 %v1806, 94
        %v2527 = vpop.permute.xlu0 %2526
        %2528 = vrot.lane.b32.xlu0 %v1807, 94
        %v2529 = vpop.permute.xlu0 %2528
        %v2530 = vsel %vm1616, %v2525, %v2527
        %v2531 = vsel %vm1616, %v2527, %v2529
        %v2533 = vsel %vm316, %v2523, 0
        %v2535 = vsel %vm320, %v2530, 0
        %v2537 = vsel %vm320, %v2531, 0
        %2539 = vmatprep.subr.mxu0 %v2537
        %2540 = vmatpush1.msra.mxu0 %v2535
        %2541 = vmatprep.subr.mxu0 0.0
        %2542 = vmatpush1.msra.mxu0 0.0
        %2543 = vmatprep.subr.mxu0 0.0
        %2544 = vmatpush1.msra.mxu0 0.0
        %2545 = vmatprep.subr.mxu0 0.0
        %2546 = vmatpush1.msra.mxu0 0.0
        %2547 = vmatprep.subr.mxu0 0.0
        %2548 = vmatpush1.msra.mxu0 0.0
        %2549 = vmatprep.subr.mxu0 0.0
        %2550 = vmatpush1.msra.mxu0 0.0
        %2551 = vmatprep.subr.mxu0 0.0
        %2552 = vmatpush1.msra.mxu0 0.0
        %2553 = vmatprep.subr.mxu0 0.0
        %2554 = vmatpush1.msra.mxu0 0.0
        %2555 = vmatprep.subr.mxu0 0.0
        %2556 = vmatpush1.msra.mxu0 0.0
        %2557 = vmatprep.subr.mxu0 0.0
        %2558 = vmatpush1.msra.mxu0 0.0
        %2559 = vmatprep.subr.mxu0 0.0
        %2560 = vmatpush1.msra.mxu0 0.0
        %2561 = vmatprep.subr.mxu0 0.0
        %2562 = vmatpush1.msra.mxu0 0.0
        %2563 = vmatprep.subr.mxu0 0.0
        %2564 = vmatpush1.msra.mxu0 0.0
        %2565 = vmatprep.subr.mxu0 0.0
        %2566 = vmatpush1.msra.mxu0 0.0
        %2567 = vmatprep.subr.mxu0 0.0
        %2568 = vmatpush1.msra.mxu0 0.0
        %2569 = vmatprep.subr.mxu0 0.0
        %2570 = vmatpush1.msra.mxu0 0.0
        %2571 = vmatprep.subr.mxu0 0.0
        %2572 = vmatpush1.msra.mxu0 0.0
        %2573 = vmatprep.subr.mxu0 0.0
        %2574 = vmatpush1.msra.mxu0 0.0
        %2575 = vmatprep.subr.mxu0 0.0
        %2576 = vmatpush1.msra.mxu0 0.0
        %2577 = vmatprep.subr.mxu0 0.0
        %2578 = vmatpush1.msra.mxu0 0.0
        %2579 = vmatprep.subr.mxu0 0.0
        %2580 = vmatpush1.msra.mxu0 0.0
        %2581 = vmatprep.subr.mxu0 0.0
        %2582 = vmatpush1.msra.mxu0 0.0
        %2583 = vmatprep.subr.mxu0 0.0
        %2584 = vmatpush1.msra.mxu0 0.0
        %2585 = vmatprep.subr.mxu0 0.0
        %2586 = vmatpush1.msra.mxu0 0.0
        %2587 = vmatprep.subr.mxu0 0.0
        %2588 = vmatpush1.msra.mxu0 0.0
        %2589 = vmatprep.subr.mxu0 0.0
        %2590 = vmatpush1.msra.mxu0 0.0
        %2591 = vmatprep.subr.mxu0 0.0
        %2592 = vmatpush1.msra.mxu0 0.0
        %2593 = vmatprep.subr.mxu0 0.0
        %2594 = vmatpush1.msra.mxu0 0.0
        %2595 = vmatprep.subr.mxu0 0.0
        %2596 = vmatpush1.msra.mxu0 0.0
        %2597 = vmatprep.subr.mxu0 0.0
        %2598 = vmatpush1.msra.mxu0 0.0
        %2599 = vmatprep.subr.mxu0 0.0
        %2600 = vmatpush1.msra.mxu0 0.0
        %2601 = vmatprep.subr.mxu0 0.0
        %2602 = vmatpush1.msra.mxu0 0.0
        %2603 = vmatprep.mubr.f32.mxu0 0.0
        %2604 = vmatmul.mubr.f32.gmra.mrb[0].mxu0 %v2533
        %v2605 = vpop.f32.mrb[0].mxu0
        %v2606 = vadd.f32 0.0, %v2605
        %v2607 = vpop.f32.mrb[0].mxu0
        %v2608 = vadd.f32 0.0, %v2607
        %2609 = vdwg.mxu0
        %v2610 = vadd.f32 %v2518, %v2606
        %v2611 = vadd.f32 %v2520, %v2608
        %vm2612 = vcmp.le.s32.totalorder %v299, 14
        %vm2613 = vcmp.le.s32.totalorder %v300, 14
        %v2614 = vsel %vm2612, 1, 0
        %v2615 = vsel %vm2613, 1, 0
        %vm2616 = vcmp.eq.s32.totalorder %v2614, 1
        %vm2617 = vcmp.eq.s32.totalorder %v2615, 1
        %v2618 = vsel %vm2616, %v2610, 0.0
        %v2619 = vsel %vm2617, %v2611, 0.0
        %v2620 = vadd.f32 %v2344, %v2618
        %v2621 = vadd.f32 %v2345, %v2619
        %v2622 = vld [vmem:[%s4] sm:$0xf]
        %2624 = vset.pattern.permute.xlu0 0
        %2625 = vperm.xlu0 %2624, %v2622
        %v2626 = vpop.permute.xlu0 %2625
        %v2628 = vadd.f32 %v2620, %v2626
        %v2629 = vadd.f32 %v2621, %v2626
        %v2632 = vadd.f32 %v2628, %v1617
        %v2633 = vadd.f32 %v2629, %v1618
        %v2636 = vcombine.low %v2632, %v2633
        %2638 = vst [vmem:[%s217] sm:$0xff] %v2636
        %s2639 = sand.u32 %s137, 1
        %s2640 = scalar_lea.sflag [#allocation3], %s2639
        %s2641 = sand.u32 %s137, 1
        %s2642 = smul.addr %s2641, 8
        %s2643 = scalar_lea.vmem [#allocation2], %s2642
        // Predicated region
        $region41: #{tpu_custom_call.1} parent=39 // pred_check
          %p2644 = pneg %p147
        $region42: #{tpu_custom_call.1} parent=39 // pred_check_branch
          %2646 = sbr.rel (%p2644) target = $region44
        $region43: #{tpu_custom_call.1} parent=39 // pred_region
          %s2648 = ssub.s32 128, 128
          %2649 = vsyncadd %s2640, %s2648
          %s2650 = smul.addr %s19, 2
          %s2651 = smul.addr %s2650, 64
          %s2652 = scalar_lea.hbm %s5, %s2651
          %s2654 = sshll.u32 %s2643, 4
          %s2655 = int_to_ptr.vmem [resolvable:$true] %s2654
          %2657 = dma.vmem_to_hbm [thread:$0]  %s2655, 128, %s2652, %s2640
        $region44: #{tpu_custom_call.1} parent=39 // pred_fallthru
          _
      $region40: #{tpu_custom_call.1} parent=5 // pred_fallthru
        _
      %p2658 = scmp.le.s32.totalorder 2, %s14
      // Predicated region
      $region45: #{tpu_custom_call.1} parent=5 // pred_check
        %p2659 = pneg %p2658
      $region46: #{tpu_custom_call.1} parent=5 // pred_check_branch
        %2661 = sbr.rel (%p2659) target = $region48
      $region47: #{tpu_custom_call.1} parent=5 // pred_region
        %s2662 = ssub.s32 %s14, 2
        // Predicated region
        $region49: #{tpu_custom_call.1} parent=47 // pred_check
          %p2663 = pneg %p153
        $region50: #{tpu_custom_call.1} parent=47 // pred_check_branch
          %2665 = sbr.rel (%p2663) target = $region52
        $region51: #{tpu_custom_call.1} parent=47 // pred_region
          %s2666 = sand.u32 %s138, 1
          %s2667 = scalar_lea.sflag [#allocation3], %s2666
          %s2668 = sand.u32 %s138, 1
          %s2669 = smul.addr %s2668, 8
          %s2670 = scalar_lea.vmem [#allocation2], %s2669
          %2671 = dma.done %s2667, 128
        $region52: #{tpu_custom_call.1} parent=47 // pred_fallthru
          _
      $region48: #{tpu_custom_call.1} parent=5 // pred_fallthru
        _
    $region6: #{tpu_custom_call.1} parent=1 // loop_footer
      %s18 = sadd.s32 1, %s14
    $region7: #{tpu_custom_call.1} parent=1 // loop_footer_branch
      %13 = sbr.rel target = $region3
    $region8: #{tpu_custom_call.1} parent=1 // loop_exit
      _
    %2672 = vsyncpa [#allocation3], 1
    %s2673 = scalar_lea.sflag [#allocation3], 1
    %2674 = vsyncpa %s2673, 1

</llo_original>
